<compile_context>
chip_gen: v6e
topology: v6e:2x2x1
jax: 0.10.0
libtpu: 0.0.40
codegen_flags: <defaults>
</compile_context>

<pallas_src>
import functools

import jax
import jax.numpy as jnp
from jax.experimental import pallas as pl
from jax.experimental.pallas import tpu as pltpu


# ----------------------------------------------------------------------------
# Device heuristics
# ----------------------------------------------------------------------------
def _device_kind():
    try:
        return jax.devices()[0].device_kind.lower()
    except Exception:
        return ""


def _default_wide_heads(dk=None):
    dk = _device_kind() if dk is None else dk
    # v2-v5 TensorCores have 128-wide MXUs: block-diagonal (2H x 2H) head
    # matmuls cost 2x the passes (half zeros).  v6e/v7x (256x256 MXU) do the
    # wide matmul in one pass, so packing halves the MXU pushes there.
    return not any(v in dk for v in ("v2", "v3", "v4", "v5"))


# ----------------------------------------------------------------------------
# Fused Pallas kernel (whole VAE forward)
# ----------------------------------------------------------------------------
def make_vae_kernel(depth, head_depth, latent_dim, hidden_dim, wide_heads):
    """Build the fused VAE forward kernel.

    Packed parameter order (each entry is a (w, b) pair of refs):
      [depth]        encoder trunk layers                       (LeakyReLU 0.2)
      [head levels]  level 0 is always the column-packed mean|var matmul;
                     deeper levels are one block-diag pair (wide_heads) or two
                     separate (mean, var) pairs per level; final level projects
                     to latent (cols [0:L] mean, [L:2L] log_var, no activation)
      [depth]        decoder trunk layers                       (LeakyReLU 0.2)
      [1]            decoder output projection                  (sigmoid)
    """
    head_pairs = head_depth if wide_heads else (2 * head_depth - 1)
    n_pairs = 2 * depth + head_pairs + 1

    def kernel(*refs):
        x_ref, eps_ref = refs[0], refs[1]
        p = refs[2:2 + 2 * n_pairs]
        o_xhat_ref, o_stats_ref = refs[2 + 2 * n_pairs:]

        idx = 0

        def next_pair():
            nonlocal idx
            w_ref, b_ref = p[idx], p[idx + 1]
            idx += 2
            return w_ref, b_ref

        def linear(h, w_ref, b_ref, act):
            # Weights already live in their compute dtype (bf16): cast only the
            # activation; MXU accumulates in f32.  Elementwise tail stays f32.
            y = jnp.dot(h.astype(w_ref.dtype), w_ref[...],
                        preferred_element_type=jnp.float32)
            y = y + b_ref[...]                       # (1, Dout) broadcasts over B
            if act == "lrelu":
                y = jnp.maximum(y, 0.2 * y)          # LeakyReLU(0.2): mul + max
            elif act == "sigmoid":
                y = jax.nn.sigmoid(y)                # EUP path
            return y

        # --- encoder trunk ---------------------------------------------------
        h = x_ref[...].astype(jnp.float32)
        for _ in range(depth):
            w, b = next_pair()
            h = linear(h, w, b, "lrelu")

        # --- mean / log-var heads --------------------------------------------
        # Level 0: both heads consume the same h -> one column-packed matmul.
        act0 = "lrelu" if head_depth > 1 else "none"
        w, b = next_pair()
        hh = linear(h, w, b, act0)

        if head_depth == 1:
            ml = hh                                  # (B, 2*latent)
        elif wide_heads:
            for lvl in range(1, head_depth):
                act = "lrelu" if lvl < head_depth - 1 else "none"
                w, b = next_pair()
                hh = linear(hh, w, b, act)           # block-diag wide matmul
            ml = hh                                  # (B, 2*latent)
        else:
            # Narrow-MXU (v5e) path: split the (B, 2H) slab at the 128-aligned
            # lane boundary and run the two towers as dense 128-wide matmuls.
            m = hh[:, :hidden_dim]
            v = hh[:, hidden_dim:]
            for lvl in range(1, head_depth):
                act = "lrelu" if lvl < head_depth - 1 else "none"
                wm, bm = next_pair()
                m = linear(m, wm, bm, act)
                wv, bv = next_pair()
                v = linear(v, wv, bv, act)
            ml = jnp.concatenate([m, v], axis=-1)    # (B, 2*latent)

        mean = ml[:, :latent_dim]
        # NOTE: slicing log_var at lane offset `latent_dim` is one small XLU
        # lane shift; negligible at latent_dim=8 (pad the final head projection
        # to a 128-lane boundary if latent_dim grows).
        log_var = ml[:, latent_dim:2 * latent_dim]

        # --- reparameterization: z = mean + exp(0.5*log_var) * eps -----------
        z = mean + jnp.exp(0.5 * log_var) * eps_ref[...].astype(jnp.float32)

        # --- decoder ----------------------------------------------------------
        d = z
        for _ in range(depth):
            w, b = next_pair()
            d = linear(d, w, b, "lrelu")
        w, b = next_pair()
        x_hat = linear(d, w, b, "sigmoid")

        o_xhat_ref[...] = x_hat.astype(o_xhat_ref.dtype)
        # mean / log_var coalesced into one lane-denser output; split outside.
        o_stats_ref[...] = ml.astype(o_stats_ref.dtype)

    return kernel, n_pairs


# ----------------------------------------------------------------------------
# Parameter packing
# ----------------------------------------------------------------------------
def _block_diag(a, b):
    za = jnp.zeros((a.shape[0], b.shape[1]), a.dtype)
    zb = jnp.zeros((b.shape[0], a.shape[1]), b.dtype)
    return jnp.concatenate(
        [jnp.concatenate([a, za], axis=1),
         jnp.concatenate([zb, b], axis=1)], axis=0)


def pack_params(params, *, wide_heads=True, weight_dtype=jnp.bfloat16):
    """Flatten raw per-layer params into the fused kernel's ordered pair list.

    Weights are stored in `weight_dtype` (bf16 by default: halves the streamed
    weight bytes, MXU-native); biases stay f32.
    """
    def cast(wb):
        w, b = wb
        return w.astype(weight_dtype), b.astype(jnp.float32)

    packed = [cast(wb) for wb in params["enc_trunk"]]

    mh, vh = params["mean_head"], params["var_head"]
    head_depth = len(mh)
    # Level 0: both heads consume the same h -> column-concat => [H, 2H].
    (wm, bm), (wv, bv) = mh[0], vh[0]
    packed.append(cast((jnp.concatenate([wm, wv], axis=1),
                        jnp.concatenate([bm, bv], axis=0))))
    # Deeper levels (incl. final latent projection).
    for lvl in range(1, head_depth):
        (wm, bm), (wv, bv) = mh[lvl], vh[lvl]
        if wide_heads:
            packed.append(cast((_block_diag(wm, wv),
                                jnp.concatenate([bm, bv], axis=0))))
        else:
            packed.append(cast((wm, bm)))
            packed.append(cast((wv, bv)))

    packed.extend(cast(wb) for wb in params["dec_trunk"])
    packed.append(cast(params["dec_out"]))
    return packed


# ----------------------------------------------------------------------------
# pallas_call wrapper
# ----------------------------------------------------------------------------
def _pick_batch_tile(B, row_bytes, weight_bytes, budget=40 << 20):
    # Prefer 256-row multiples (fills the 256-deep MXU on v6e/v7x; multiple of
    # 16 rows for bf16 sublane packing) but stay inside a conservative VMEM
    # budget: batched in/out blocks are double-buffered, weights resident once.
    for tb in (1024, 512, 256, 128):
        if B >= tb and B % tb == 0:
            if 2 * 2 * tb * row_bytes + weight_bytes <= budget:
                return tb
    return B


def vae_forward_pallas(packed, x, eps, *, depth, head_depth, latent_dim,
                       hidden_dim, wide_heads):
    B, in_dim = x.shape
    out_dim = packed[-1][0].shape[1]

    kernel, n_pairs = make_vae_kernel(depth, head_depth, latent_dim,
                                      hidden_dim, wide_heads)
    assert len(packed) == n_pairs

    weight_bytes = sum(int(w.size) * w.dtype.itemsize + int(b.size) * 4
                       for w, b in packed)
    row_bytes = (in_dim + latent_dim + out_dim + 2 * latent_dim) * 4
    TB = _pick_batch_tile(B, row_bytes, weight_bytes)
    num_steps = B // TB
    grid = (num_steps,)

    def batched_spec(d):
        return pl.BlockSpec((TB, d), lambda i: (i, 0))

    if num_steps > 1:
        # Constant-index resident params: single-buffer them (double-buffering
        # a block whose index never changes is pure VMEM waste).
        def resident_spec(shape):
            return pl.BlockSpec(shape, lambda i: (0, 0),
                                pipeline_mode=pl.Buffered(1))
    else:
        def resident_spec(shape):
            return pl.BlockSpec(shape, lambda i: (0, 0))

    in_specs = [batched_spec(in_dim), batched_spec(latent_dim)]
    flat_inputs = [x, eps]
    for w, b in packed:
        b2 = b.reshape(1, -1)
        in_specs.append(resident_spec(w.shape))
        flat_inputs.append(w)
        in_specs.append(resident_spec(b2.shape))
        flat_inputs.append(b2)

    out_shape = (jax.ShapeDtypeStruct((B, out_dim), x.dtype),
                 jax.ShapeDtypeStruct((B, 2 * latent_dim), x.dtype))
    out_specs = (batched_spec(out_dim), batched_spec(2 * latent_dim))

    dk = _device_kind()
    if num_steps >= 2 and "v7" in dk:
        # Real 2-TensorCore sharding of the batch grid on v7x.
        semantics = (pltpu.CORE_PARALLEL,)
    else:
        semantics = ("parallel",) if num_steps > 1 else ("arbitrary",)

    # Explicit VMEM budget (headroom over the double-buffered IO + weights).
    est = 2 * 2 * TB * row_bytes + 2 * weight_bytes
    vmem_limit = int(min(max(2 * est, 16 << 20), 48 << 20))

    x_hat, stats = pl.pallas_call(
        kernel,
        out_shape=out_shape,
        grid=grid,
        in_specs=in_specs,
        out_specs=out_specs,
        compiler_params=pltpu.CompilerParams(
            dimension_semantics=semantics,
            vmem_limit_bytes=vmem_limit),
    )(*flat_inputs)

    mean = stats[:, :latent_dim]
    log_var = stats[:, latent_dim:]
    return x_hat, mean, log_var


# ----------------------------------------------------------------------------
# Deterministic parameter init (mirrors nn.Linear default: U(-1/sqrt(fan_in),.))
# ----------------------------------------------------------------------------
def init_linear(key, fan_in, fan_out, dtype=jnp.float32):
    kw, kb = jax.random.split(key)
    bound = 1.0 / jnp.sqrt(fan_in)
    w = jax.random.uniform(kw, (fan_in, fan_out), dtype, -bound, bound)
    b = jax.random.uniform(kb, (fan_out,), dtype, -bound, bound)
    return w, b


def init_vae_params(key, input_dim, hidden_dim, latent_dim, output_dim,
                    depth=3, head_depth=3):
    params = {}
    keys = iter(jax.random.split(key, 64))

    trunk = [init_linear(next(keys), input_dim, hidden_dim)]
    for _ in range(depth - 1):
        trunk.append(init_linear(next(keys), hidden_dim, hidden_dim))
    params["enc_trunk"] = trunk

    for name in ("mean_head", "var_head"):
        head = []
        for _ in range(head_depth - 1):
            head.append(init_linear(next(keys), hidden_dim, hidden_dim))
        head.append(init_linear(next(keys), hidden_dim, latent_dim))
        params[name] = head

    dec = [init_linear(next(keys), latent_dim, hidden_dim)]
    for _ in range(depth - 1):
        dec.append(init_linear(next(keys), hidden_dim, hidden_dim))
    params["dec_trunk"] = dec

    params["dec_out"] = init_linear(next(keys), hidden_dim, output_dim)
    return params


# ----------------------------------------------------------------------------
# Pure-JAX reference (un-packed weights, same bf16 quantization) for checking
# ----------------------------------------------------------------------------
def vae_forward_ref(params, x, eps, compute_dtype=jnp.bfloat16):
    def mm(h, w):
        return jnp.dot(h.astype(compute_dtype), w.astype(compute_dtype),
                       preferred_element_type=jnp.float32)

    lrelu = lambda y: jnp.maximum(y, 0.2 * y)
    h = x.astype(jnp.float32)
    for w, b in params["enc_trunk"]:
        h = lrelu(mm(h, w) + b)
    m = h
    for w, b in params["mean_head"][:-1]:
        m = lrelu(mm(m, w) + b)
    w, b = params["mean_head"][-1]
    mean = mm(m, w) + b
    v = h
    for w, b in params["var_head"][:-1]:
        v = lrelu(mm(v, w) + b)
    w, b = params["var_head"][-1]
    log_var = mm(v, w) + b
    z = mean + jnp.exp(0.5 * log_var) * eps
    d = z
    for w, b in params["dec_trunk"]:
        d = lrelu(mm(d, w) + b)
    w, b = params["dec_out"]
    x_hat = jax.nn.sigmoid(mm(d, w) + b)
    return x_hat, mean, log_var


# ----------------------------------------------------------------------------
if __name__ == "__main__":
    # Small shapes consistent with the module (Encoder/Decoder defaults scaled
    # down): depth=3 trunk, head_depth=3 heads.
    B, INPUT_DIM, HIDDEN_DIM, LATENT_DIM, OUTPUT_DIM = 8, 256, 128, 8, 256
    DEPTH, HEAD_DEPTH = 3, 3

    key = jax.random.PRNGKey(0)
    k_params, k_x, k_eps = jax.random.split(key, 3)

    params = init_vae_params(k_params, INPUT_DIM, HIDDEN_DIM, LATENT_DIM,
                             OUTPUT_DIM, depth=DEPTH, head_depth=HEAD_DEPTH)

    wide_heads = _default_wide_heads()
    # Weights stored in bf16 (halves the dominant weight-DMA bytes, MXU-native);
    # biases and all elementwise math stay f32.
    packed = pack_params(params, wide_heads=wide_heads,
                         weight_dtype=jnp.bfloat16)

    x = jax.random.normal(k_x, (B, INPUT_DIM), jnp.float32)
    # TODO(synk): epsilon (torch.randn_like) is drawn host-side with jax.random;
    # the reparameterization arithmetic itself is fused inside the kernel.
    eps = jax.random.normal(k_eps, (B, LATENT_DIM), jnp.float32)

    fwd = jax.jit(functools.partial(
        vae_forward_pallas, depth=DEPTH, head_depth=HEAD_DEPTH,
        latent_dim=LATENT_DIM, hidden_dim=HIDDEN_DIM, wide_heads=wide_heads))

    x_hat, mean, log_var = jax.block_until_ready(fwd(packed, x, eps))

    # Reference with matching bf16 weight/activation quantization.
    x_hat_ref, mean_ref, log_var_ref = vae_forward_ref(
        params, x, eps, compute_dtype=jnp.bfloat16)

    assert x_hat.shape == (B, OUTPUT_DIM)
    assert mean.shape == (B, LATENT_DIM)
    assert log_var.shape == (B, LATENT_DIM)
    assert jnp.allclose(x_hat, x_hat_ref, atol=2e-3, rtol=2e-3)
    assert jnp.allclose(mean, mean_ref, atol=2e-3, rtol=2e-3)
    assert jnp.allclose(log_var, log_var_ref, atol=2e-3, rtol=2e-3)

    print("KERNEL_OK")
</pallas_src>

<mosaic_0001>
module attributes {stable_mosaic.version = 11 : i64} {
  func.func @kernel(%arg0: i32, %arg1: memref<8x256xf32, #tpu.memory_space<vmem>>, %arg2: memref<8x8xf32, #tpu.memory_space<vmem>>, %arg3: memref<256x128xbf16, #tpu.memory_space<vmem>>, %arg4: memref<1x128xf32, #tpu.memory_space<vmem>>, %arg5: memref<128x128xbf16, #tpu.memory_space<vmem>>, %arg6: memref<1x128xf32, #tpu.memory_space<vmem>>, %arg7: memref<128x128xbf16, #tpu.memory_space<vmem>>, %arg8: memref<1x128xf32, #tpu.memory_space<vmem>>, %arg9: memref<128x256xbf16, #tpu.memory_space<vmem>>, %arg10: memref<1x256xf32, #tpu.memory_space<vmem>>, %arg11: memref<256x256xbf16, #tpu.memory_space<vmem>>, %arg12: memref<1x256xf32, #tpu.memory_space<vmem>>, %arg13: memref<256x16xbf16, #tpu.memory_space<vmem>>, %arg14: memref<1x16xf32, #tpu.memory_space<vmem>>, %arg15: memref<8x128xbf16, #tpu.memory_space<vmem>>, %arg16: memref<1x128xf32, #tpu.memory_space<vmem>>, %arg17: memref<128x128xbf16, #tpu.memory_space<vmem>>, %arg18: memref<1x128xf32, #tpu.memory_space<vmem>>, %arg19: memref<128x128xbf16, #tpu.memory_space<vmem>>, %arg20: memref<1x128xf32, #tpu.memory_space<vmem>>, %arg21: memref<128x256xbf16, #tpu.memory_space<vmem>>, %arg22: memref<1x256xf32, #tpu.memory_space<vmem>>, %arg23: memref<8x256xf32, #tpu.memory_space<vmem>>, %arg24: memref<8x16xf32, #tpu.memory_space<vmem>>) attributes {dimension_semantics = [#tpu.dimension_semantics<arbitrary>], iteration_bounds = array<i64: 1>, scalar_prefetch = 0 : i64, scratch_operands = 0 : i64, tpu.core_type = #tpu.core_type<tc>, window_params = [{transform_indices = @transform_0, window_bounds = array<i64: 8, 256>}, {transform_indices = @transform_1, window_bounds = array<i64: 8, 8>}, {pipeline_mode = #tpu.pipeline_mode<synchronous>, transform_indices = @transform_2, window_bounds = array<i64: 256, 128>}, {pipeline_mode = #tpu.pipeline_mode<synchronous>, transform_indices = @transform_3, window_bounds = array<i64: 1, 128>}, {pipeline_mode = #tpu.pipeline_mode<synchronous>, transform_indices = @transform_4, window_bounds = array<i64: 128, 128>}, {pipeline_mode = #tpu.pipeline_mode<synchronous>, transform_indices = @transform_5, window_bounds = array<i64: 1, 128>}, {pipeline_mode = #tpu.pipeline_mode<synchronous>, transform_indices = @transform_6, window_bounds = array<i64: 128, 128>}, {pipeline_mode = #tpu.pipeline_mode<synchronous>, transform_indices = @transform_7, window_bounds = array<i64: 1, 128>}, {pipeline_mode = #tpu.pipeline_mode<synchronous>, transform_indices = @transform_8, window_bounds = array<i64: 128, 256>}, {pipeline_mode = #tpu.pipeline_mode<synchronous>, transform_indices = @transform_9, window_bounds = array<i64: 1, 256>}, {pipeline_mode = #tpu.pipeline_mode<synchronous>, transform_indices = @transform_10, window_bounds = array<i64: 256, 256>}, {pipeline_mode = #tpu.pipeline_mode<synchronous>, transform_indices = @transform_11, window_bounds = array<i64: 1, 256>}, {pipeline_mode = #tpu.pipeline_mode<synchronous>, transform_indices = @transform_12, window_bounds = array<i64: 256, 16>}, {pipeline_mode = #tpu.pipeline_mode<synchronous>, transform_indices = @transform_13, window_bounds = array<i64: 1, 16>}, {pipeline_mode = #tpu.pipeline_mode<synchronous>, transform_indices = @transform_14, window_bounds = array<i64: 8, 128>}, {pipeline_mode = #tpu.pipeline_mode<synchronous>, transform_indices = @transform_15, window_bounds = array<i64: 1, 128>}, {pipeline_mode = #tpu.pipeline_mode<synchronous>, transform_indices = @transform_16, window_bounds = array<i64: 128, 128>}, {pipeline_mode = #tpu.pipeline_mode<synchronous>, transform_indices = @transform_17, window_bounds = array<i64: 1, 128>}, {pipeline_mode = #tpu.pipeline_mode<synchronous>, transform_indices = @transform_18, window_bounds = array<i64: 128, 128>}, {pipeline_mode = #tpu.pipeline_mode<synchronous>, transform_indices = @transform_19, window_bounds = array<i64: 1, 128>}, {pipeline_mode = #tpu.pipeline_mode<synchronous>, transform_indices = @transform_20, window_bounds = array<i64: 128, 256>}, {pipeline_mode = #tpu.pipeline_mode<synchronous>, transform_indices = @transform_21, window_bounds = array<i64: 1, 256>}, {transform_indices = @transform_22, window_bounds = array<i64: 8, 256>}, {transform_indices = @transform_23, window_bounds = array<i64: 8, 16>}]} {
    %c0 = arith.constant 0 : index
    %c0_0 = arith.constant 0 : index
    %0 = vector.load %arg1[%c0, %c0_0] : memref<8x256xf32, #tpu.memory_space<vmem>>, vector<8x256xf32>
    %1 = arith.truncf %0 : vector<8x256xf32> to vector<8x256xbf16>
    %c0_1 = arith.constant 0 : index
    %c0_2 = arith.constant 0 : index
    %2 = vector.load %arg3[%c0_1, %c0_2] : memref<256x128xbf16, #tpu.memory_space<vmem>>, vector<256x128xbf16>
    %cst = arith.constant dense<0.000000e+00> : vector<8x128xf32>
    %3 = tpu.matmul %1, %2, %cst {dimension_numbers = #tpu.dot_dimension_numbers<[1], [0], [0], [1], [0, 0, 1, 1], [], []>} : vector<8x256xbf16>, vector<256x128xbf16>, vector<8x128xf32> -> vector<8x128xf32>
    %c0_3 = arith.constant 0 : index
    %c0_4 = arith.constant 0 : index
    %4 = vector.load %arg4[%c0_3, %c0_4] : memref<1x128xf32, #tpu.memory_space<vmem>>, vector<1x128xf32>
    %5 = vector.broadcast %4 : vector<1x128xf32> to vector<8x128xf32>
    %6 = arith.addf %3, %5 : vector<8x128xf32>
    %cst_5 = arith.constant 2.000000e-01 : f32
    %7 = vector.broadcast %cst_5 : f32 to vector<8x128xf32>
    %8 = arith.mulf %7, %6 : vector<8x128xf32>
    %9 = arith.maximumf %6, %8 : vector<8x128xf32>
    %10 = arith.truncf %9 : vector<8x128xf32> to vector<8x128xbf16>
    %c0_6 = arith.constant 0 : index
    %c0_7 = arith.constant 0 : index
    %11 = vector.load %arg5[%c0_6, %c0_7] : memref<128x128xbf16, #tpu.memory_space<vmem>>, vector<128x128xbf16>
    %cst_8 = arith.constant dense<0.000000e+00> : vector<8x128xf32>
    %12 = tpu.matmul %10, %11, %cst_8 {dimension_numbers = #tpu.dot_dimension_numbers<[1], [0], [0], [1], [0, 0, 1, 1], [], []>} : vector<8x128xbf16>, vector<128x128xbf16>, vector<8x128xf32> -> vector<8x128xf32>
    %c0_9 = arith.constant 0 : index
    %c0_10 = arith.constant 0 : index
    %13 = vector.load %arg6[%c0_9, %c0_10] : memref<1x128xf32, #tpu.memory_space<vmem>>, vector<1x128xf32>
    %14 = vector.broadcast %13 : vector<1x128xf32> to vector<8x128xf32>
    %15 = arith.addf %12, %14 : vector<8x128xf32>
    %cst_11 = arith.constant 2.000000e-01 : f32
    %16 = vector.broadcast %cst_11 : f32 to vector<8x128xf32>
    %17 = arith.mulf %16, %15 : vector<8x128xf32>
    %18 = arith.maximumf %15, %17 : vector<8x128xf32>
    %19 = arith.truncf %18 : vector<8x128xf32> to vector<8x128xbf16>
    %c0_12 = arith.constant 0 : index
    %c0_13 = arith.constant 0 : index
    %20 = vector.load %arg7[%c0_12, %c0_13] : memref<128x128xbf16, #tpu.memory_space<vmem>>, vector<128x128xbf16>
    %cst_14 = arith.constant dense<0.000000e+00> : vector<8x128xf32>
    %21 = tpu.matmul %19, %20, %cst_14 {dimension_numbers = #tpu.dot_dimension_numbers<[1], [0], [0], [1], [0, 0, 1, 1], [], []>} : vector<8x128xbf16>, vector<128x128xbf16>, vector<8x128xf32> -> vector<8x128xf32>
    %c0_15 = arith.constant 0 : index
    %c0_16 = arith.constant 0 : index
    %22 = vector.load %arg8[%c0_15, %c0_16] : memref<1x128xf32, #tpu.memory_space<vmem>>, vector<1x128xf32>
    %23 = vector.broadcast %22 : vector<1x128xf32> to vector<8x128xf32>
    %24 = arith.addf %21, %23 : vector<8x128xf32>
    %cst_17 = arith.constant 2.000000e-01 : f32
    %25 = vector.broadcast %cst_17 : f32 to vector<8x128xf32>
    %26 = arith.mulf %25, %24 : vector<8x128xf32>
    %27 = arith.maximumf %24, %26 : vector<8x128xf32>
    %28 = arith.truncf %27 : vector<8x128xf32> to vector<8x128xbf16>
    %c0_18 = arith.constant 0 : index
    %c0_19 = arith.constant 0 : index
    %29 = vector.load %arg9[%c0_18, %c0_19] : memref<128x256xbf16, #tpu.memory_space<vmem>>, vector<128x256xbf16>
    %cst_20 = arith.constant dense<0.000000e+00> : vector<8x256xf32>
    %30 = tpu.matmul %28, %29, %cst_20 {dimension_numbers = #tpu.dot_dimension_numbers<[1], [0], [0], [1], [0, 0, 1, 1], [], []>} : vector<8x128xbf16>, vector<128x256xbf16>, vector<8x256xf32> -> vector<8x256xf32>
    %c0_21 = arith.constant 0 : index
    %c0_22 = arith.constant 0 : index
    %31 = vector.load %arg10[%c0_21, %c0_22] : memref<1x256xf32, #tpu.memory_space<vmem>>, vector<1x256xf32>
    %32 = vector.broadcast %31 : vector<1x256xf32> to vector<8x256xf32>
    %33 = arith.addf %30, %32 : vector<8x256xf32>
    %cst_23 = arith.constant 2.000000e-01 : f32
    %34 = vector.broadcast %cst_23 : f32 to vector<8x256xf32>
    %35 = arith.mulf %34, %33 : vector<8x256xf32>
    %36 = arith.maximumf %33, %35 : vector<8x256xf32>
    %37 = arith.truncf %36 : vector<8x256xf32> to vector<8x256xbf16>
    %c0_24 = arith.constant 0 : index
    %c0_25 = arith.constant 0 : index
    %38 = vector.load %arg11[%c0_24, %c0_25] : memref<256x256xbf16, #tpu.memory_space<vmem>>, vector<256x256xbf16>
    %cst_26 = arith.constant dense<0.000000e+00> : vector<8x256xf32>
    %39 = tpu.matmul %37, %38, %cst_26 {dimension_numbers = #tpu.dot_dimension_numbers<[1], [0], [0], [1], [0, 0, 1, 1], [], []>} : vector<8x256xbf16>, vector<256x256xbf16>, vector<8x256xf32> -> vector<8x256xf32>
    %c0_27 = arith.constant 0 : index
    %c0_28 = arith.constant 0 : index
    %40 = vector.load %arg12[%c0_27, %c0_28] : memref<1x256xf32, #tpu.memory_space<vmem>>, vector<1x256xf32>
    %41 = vector.broadcast %40 : vector<1x256xf32> to vector<8x256xf32>
    %42 = arith.addf %39, %41 : vector<8x256xf32>
    %cst_29 = arith.constant 2.000000e-01 : f32
    %43 = vector.broadcast %cst_29 : f32 to vector<8x256xf32>
    %44 = arith.mulf %43, %42 : vector<8x256xf32>
    %45 = arith.maximumf %42, %44 : vector<8x256xf32>
    %46 = arith.truncf %45 : vector<8x256xf32> to vector<8x256xbf16>
    %c0_30 = arith.constant 0 : index
    %c0_31 = arith.constant 0 : index
    %47 = vector.load %arg13[%c0_30, %c0_31] : memref<256x16xbf16, #tpu.memory_space<vmem>>, vector<256x16xbf16>
    %cst_32 = arith.constant dense<0.000000e+00> : vector<8x16xf32>
    %48 = tpu.matmul %46, %47, %cst_32 {dimension_numbers = #tpu.dot_dimension_numbers<[1], [0], [0], [1], [0, 0, 1, 1], [], []>} : vector<8x256xbf16>, vector<256x16xbf16>, vector<8x16xf32> -> vector<8x16xf32>
    %c0_33 = arith.constant 0 : index
    %c0_34 = arith.constant 0 : index
    %49 = vector.load %arg14[%c0_33, %c0_34] : memref<1x16xf32, #tpu.memory_space<vmem>>, vector<1x16xf32>
    %50 = vector.broadcast %49 : vector<1x16xf32> to vector<8x16xf32>
    %51 = arith.addf %48, %50 : vector<8x16xf32>
    %52 = vector.extract_strided_slice %51 {offsets = [0, 0], sizes = [8, 8], strides = [1, 1]} : vector<8x16xf32> to vector<8x8xf32>
    %53 = vector.extract_strided_slice %51 {offsets = [0, 8], sizes = [8, 8], strides = [1, 1]} : vector<8x16xf32> to vector<8x8xf32>
    %cst_35 = arith.constant 5.000000e-01 : f32
    %54 = vector.broadcast %cst_35 : f32 to vector<8x8xf32>
    %55 = arith.mulf %54, %53 : vector<8x8xf32>
    %56 = math.exp %55 : vector<8x8xf32>
    %c0_36 = arith.constant 0 : index
    %c0_37 = arith.constant 0 : index
    %57 = vector.load %arg2[%c0_36, %c0_37] : memref<8x8xf32, #tpu.memory_space<vmem>>, vector<8x8xf32>
    %58 = arith.mulf %56, %57 : vector<8x8xf32>
    %59 = arith.addf %52, %58 : vector<8x8xf32>
    %60 = arith.truncf %59 : vector<8x8xf32> to vector<8x8xbf16>
    %c0_38 = arith.constant 0 : index
    %c0_39 = arith.constant 0 : index
    %61 = vector.load %arg15[%c0_38, %c0_39] : memref<8x128xbf16, #tpu.memory_space<vmem>>, vector<8x128xbf16>
    %cst_40 = arith.constant dense<0.000000e+00> : vector<8x128xf32>
    %62 = tpu.matmul %60, %61, %cst_40 {dimension_numbers = #tpu.dot_dimension_numbers<[1], [0], [0], [1], [0, 0, 1, 1], [], []>} : vector<8x8xbf16>, vector<8x128xbf16>, vector<8x128xf32> -> vector<8x128xf32>
    %c0_41 = arith.constant 0 : index
    %c0_42 = arith.constant 0 : index
    %63 = vector.load %arg16[%c0_41, %c0_42] : memref<1x128xf32, #tpu.memory_space<vmem>>, vector<1x128xf32>
    %64 = vector.broadcast %63 : vector<1x128xf32> to vector<8x128xf32>
    %65 = arith.addf %62, %64 : vector<8x128xf32>
    %cst_43 = arith.constant 2.000000e-01 : f32
    %66 = vector.broadcast %cst_43 : f32 to vector<8x128xf32>
    %67 = arith.mulf %66, %65 : vector<8x128xf32>
    %68 = arith.maximumf %65, %67 : vector<8x128xf32>
    %69 = arith.truncf %68 : vector<8x128xf32> to vector<8x128xbf16>
    %c0_44 = arith.constant 0 : index
    %c0_45 = arith.constant 0 : index
    %70 = vector.load %arg17[%c0_44, %c0_45] : memref<128x128xbf16, #tpu.memory_space<vmem>>, vector<128x128xbf16>
    %cst_46 = arith.constant dense<0.000000e+00> : vector<8x128xf32>
    %71 = tpu.matmul %69, %70, %cst_46 {dimension_numbers = #tpu.dot_dimension_numbers<[1], [0], [0], [1], [0, 0, 1, 1], [], []>} : vector<8x128xbf16>, vector<128x128xbf16>, vector<8x128xf32> -> vector<8x128xf32>
    %c0_47 = arith.constant 0 : index
    %c0_48 = arith.constant 0 : index
    %72 = vector.load %arg18[%c0_47, %c0_48] : memref<1x128xf32, #tpu.memory_space<vmem>>, vector<1x128xf32>
    %73 = vector.broadcast %72 : vector<1x128xf32> to vector<8x128xf32>
    %74 = arith.addf %71, %73 : vector<8x128xf32>
    %cst_49 = arith.constant 2.000000e-01 : f32
    %75 = vector.broadcast %cst_49 : f32 to vector<8x128xf32>
    %76 = arith.mulf %75, %74 : vector<8x128xf32>
    %77 = arith.maximumf %74, %76 : vector<8x128xf32>
    %78 = arith.truncf %77 : vector<8x128xf32> to vector<8x128xbf16>
    %c0_50 = arith.constant 0 : index
    %c0_51 = arith.constant 0 : index
    %79 = vector.load %arg19[%c0_50, %c0_51] : memref<128x128xbf16, #tpu.memory_space<vmem>>, vector<128x128xbf16>
    %cst_52 = arith.constant dense<0.000000e+00> : vector<8x128xf32>
    %80 = tpu.matmul %78, %79, %cst_52 {dimension_numbers = #tpu.dot_dimension_numbers<[1], [0], [0], [1], [0, 0, 1, 1], [], []>} : vector<8x128xbf16>, vector<128x128xbf16>, vector<8x128xf32> -> vector<8x128xf32>
    %c0_53 = arith.constant 0 : index
    %c0_54 = arith.constant 0 : index
    %81 = vector.load %arg20[%c0_53, %c0_54] : memref<1x128xf32, #tpu.memory_space<vmem>>, vector<1x128xf32>
    %82 = vector.broadcast %81 : vector<1x128xf32> to vector<8x128xf32>
    %83 = arith.addf %80, %82 : vector<8x128xf32>
    %cst_55 = arith.constant 2.000000e-01 : f32
    %84 = vector.broadcast %cst_55 : f32 to vector<8x128xf32>
    %85 = arith.mulf %84, %83 : vector<8x128xf32>
    %86 = arith.maximumf %83, %85 : vector<8x128xf32>
    %87 = arith.truncf %86 : vector<8x128xf32> to vector<8x128xbf16>
    %c0_56 = arith.constant 0 : index
    %c0_57 = arith.constant 0 : index
    %88 = vector.load %arg21[%c0_56, %c0_57] : memref<128x256xbf16, #tpu.memory_space<vmem>>, vector<128x256xbf16>
    %cst_58 = arith.constant dense<0.000000e+00> : vector<8x256xf32>
    %89 = tpu.matmul %87, %88, %cst_58 {dimension_numbers = #tpu.dot_dimension_numbers<[1], [0], [0], [1], [0, 0, 1, 1], [], []>} : vector<8x128xbf16>, vector<128x256xbf16>, vector<8x256xf32> -> vector<8x256xf32>
    %c0_59 = arith.constant 0 : index
    %c0_60 = arith.constant 0 : index
    %90 = vector.load %arg22[%c0_59, %c0_60] : memref<1x256xf32, #tpu.memory_space<vmem>>, vector<1x256xf32>
    %91 = vector.broadcast %90 : vector<1x256xf32> to vector<8x256xf32>
    %92 = arith.addf %89, %91 : vector<8x256xf32>
    %93 = arith.negf %92 : vector<8x256xf32>
    %94 = math.exp %93 : vector<8x256xf32>
    %cst_61 = arith.constant 1.000000e+00 : f32
    %95 = vector.broadcast %cst_61 : f32 to vector<8x256xf32>
    %96 = arith.addf %95, %94 : vector<8x256xf32>
    %97 = arith.divf %95, %96 : vector<8x256xf32>
    %c0_62 = arith.constant 0 : index
    %c0_63 = arith.constant 0 : index
    %98 = vector.load %arg23[%c0_62, %c0_63] : memref<8x256xf32, #tpu.memory_space<vmem>>, vector<8x256xf32>
    tpu.vector_store %arg23[%c0_62, %c0_63], %97 {strides = array<i32>} : memref<8x256xf32, #tpu.memory_space<vmem>>, vector<8x256xf32>,
    %c0_64 = arith.constant 0 : index
    %c0_65 = arith.constant 0 : index
    %99 = vector.load %arg24[%c0_64, %c0_65] : memref<8x16xf32, #tpu.memory_space<vmem>>, vector<8x16xf32>
    tpu.vector_store %arg24[%c0_64, %c0_65], %51 {strides = array<i32>} : memref<8x16xf32, #tpu.memory_space<vmem>>, vector<8x16xf32>,
    return
  }
  func.func @transform_0(%arg0: i32) -> (i32, i32) {
    %c0_i32 = arith.constant 0 : i32
    %c0_i32_0 = arith.constant 0 : i32
    return %arg0, %c0_i32 : i32, i32
  }
  func.func @transform_1(%arg0: i32) -> (i32, i32) {
    %c0_i32 = arith.constant 0 : i32
    %c0_i32_0 = arith.constant 0 : i32
    return %arg0, %c0_i32 : i32, i32
  }
  func.func @transform_2(%arg0: i32) -> (i32, i32) {
    %c0_i32 = arith.constant 0 : i32
    %c0_i32_0 = arith.constant 0 : i32
    %c0_i32_1 = arith.constant 0 : i32
    return %c0_i32, %c0_i32_0 : i32, i32
  }
  func.func @transform_3(%arg0: i32) -> (i32, i32) {
    %c0_i32 = arith.constant 0 : i32
    %c0_i32_0 = arith.constant 0 : i32
    %c0_i32_1 = arith.constant 0 : i32
    return %c0_i32, %c0_i32_0 : i32, i32
  }
  func.func @transform_4(%arg0: i32) -> (i32, i32) {
    %c0_i32 = arith.constant 0 : i32
    %c0_i32_0 = arith.constant 0 : i32
    %c0_i32_1 = arith.constant 0 : i32
    return %c0_i32, %c0_i32_0 : i32, i32
  }
  func.func @transform_5(%arg0: i32) -> (i32, i32) {
    %c0_i32 = arith.constant 0 : i32
    %c0_i32_0 = arith.constant 0 : i32
    %c0_i32_1 = arith.constant 0 : i32
    return %c0_i32, %c0_i32_0 : i32, i32
  }
  func.func @transform_6(%arg0: i32) -> (i32, i32) {
    %c0_i32 = arith.constant 0 : i32
    %c0_i32_0 = arith.constant 0 : i32
    %c0_i32_1 = arith.constant 0 : i32
    return %c0_i32, %c0_i32_0 : i32, i32
  }
  func.func @transform_7(%arg0: i32) -> (i32, i32) {
    %c0_i32 = arith.constant 0 : i32
    %c0_i32_0 = arith.constant 0 : i32
    %c0_i32_1 = arith.constant 0 : i32
    return %c0_i32, %c0_i32_0 : i32, i32
  }
  func.func @transform_8(%arg0: i32) -> (i32, i32) {
    %c0_i32 = arith.constant 0 : i32
    %c0_i32_0 = arith.constant 0 : i32
    %c0_i32_1 = arith.constant 0 : i32
    return %c0_i32, %c0_i32_0 : i32, i32
  }
  func.func @transform_9(%arg0: i32) -> (i32, i32) {
    %c0_i32 = arith.constant 0 : i32
    %c0_i32_0 = arith.constant 0 : i32
    %c0_i32_1 = arith.constant 0 : i32
    return %c0_i32, %c0_i32_0 : i32, i32
  }
  func.func @transform_10(%arg0: i32) -> (i32, i32) {
    %c0_i32 = arith.constant 0 : i32
    %c0_i32_0 = arith.constant 0 : i32
    %c0_i32_1 = arith.constant 0 : i32
    return %c0_i32, %c0_i32_0 : i32, i32
  }
  func.func @transform_11(%arg0: i32) -> (i32, i32) {
    %c0_i32 = arith.constant 0 : i32
    %c0_i32_0 = arith.constant 0 : i32
    %c0_i32_1 = arith.constant 0 : i32
    return %c0_i32, %c0_i32_0 : i32, i32
  }
  func.func @transform_12(%arg0: i32) -> (i32, i32) {
    %c0_i32 = arith.constant 0 : i32
    %c0_i32_0 = arith.constant 0 : i32
    %c0_i32_1 = arith.constant 0 : i32
    return %c0_i32, %c0_i32_0 : i32, i32
  }
  func.func @transform_13(%arg0: i32) -> (i32, i32) {
    %c0_i32 = arith.constant 0 : i32
    %c0_i32_0 = arith.constant 0 : i32
    %c0_i32_1 = arith.constant 0 : i32
    return %c0_i32, %c0_i32_0 : i32, i32
  }
  func.func @transform_14(%arg0: i32) -> (i32, i32) {
    %c0_i32 = arith.constant 0 : i32
    %c0_i32_0 = arith.constant 0 : i32
    %c0_i32_1 = arith.constant 0 : i32
    return %c0_i32, %c0_i32_0 : i32, i32
  }
  func.func @transform_15(%arg0: i32) -> (i32, i32) {
    %c0_i32 = arith.constant 0 : i32
    %c0_i32_0 = arith.constant 0 : i32
    %c0_i32_1 = arith.constant 0 : i32
    return %c0_i32, %c0_i32_0 : i32, i32
  }
  func.func @transform_16(%arg0: i32) -> (i32, i32) {
    %c0_i32 = arith.constant 0 : i32
    %c0_i32_0 = arith.constant 0 : i32
    %c0_i32_1 = arith.constant 0 : i32
    return %c0_i32, %c0_i32_0 : i32, i32
  }
  func.func @transform_17(%arg0: i32) -> (i32, i32) {
    %c0_i32 = arith.constant 0 : i32
    %c0_i32_0 = arith.constant 0 : i32
    %c0_i32_1 = arith.constant 0 : i32
    return %c0_i32, %c0_i32_0 : i32, i32
  }
  func.func @transform_18(%arg0: i32) -> (i32, i32) {
    %c0_i32 = arith.constant 0 : i32
    %c0_i32_0 = arith.constant 0 : i32
    %c0_i32_1 = arith.constant 0 : i32
    return %c0_i32, %c0_i32_0 : i32, i32
  }
  func.func @transform_19(%arg0: i32) -> (i32, i32) {
    %c0_i32 = arith.constant 0 : i32
    %c0_i32_0 = arith.constant 0 : i32
    %c0_i32_1 = arith.constant 0 : i32
    return %c0_i32, %c0_i32_0 : i32, i32
  }
  func.func @transform_20(%arg0: i32) -> (i32, i32) {
    %c0_i32 = arith.constant 0 : i32
    %c0_i32_0 = arith.constant 0 : i32
    %c0_i32_1 = arith.constant 0 : i32
    return %c0_i32, %c0_i32_0 : i32, i32
  }
  func.func @transform_21(%arg0: i32) -> (i32, i32) {
    %c0_i32 = arith.constant 0 : i32
    %c0_i32_0 = arith.constant 0 : i32
    %c0_i32_1 = arith.constant 0 : i32
    return %c0_i32, %c0_i32_0 : i32, i32
  }
  func.func @transform_22(%arg0: i32) -> (i32, i32) {
    %c0_i32 = arith.constant 0 : i32
    %c0_i32_0 = arith.constant 0 : i32
    return %arg0, %c0_i32 : i32, i32
  }
  func.func @transform_23(%arg0: i32) -> (i32, i32) {
    %c0_i32 = arith.constant 0 : i32
    %c0_i32_0 = arith.constant 0 : i32
    return %arg0, %c0_i32 : i32, i32
  }
}

</mosaic_0001>

<llo_original>
// kernel: vae_forward_pallas.1
$region0: #{vae_forward_pallas.1}
  #allocation0 [shape = 'u32[]', space=smem, size = 0x4, offset = 0x4, fixed_abs, tag = 'smem constant byte address 0x4 - core index']
  #allocation1 [shape = 'u32[144,128]{1,0:T(1,128)}', space=vmem, size = 0x12000, scoped, tag = 'internal scratch']
  %s0 = inlined_call_operand.vmem [shape: f32[8,256], index: 0, kind: input, shape index: {}]
  %s1 = inlined_call_operand.vmem [shape: f32[8,8], index: 1, kind: input, shape index: {}]
  %s2 = inlined_call_operand.vmem [shape: bf16[256,128], index: 2, kind: input, shape index: {}]
  %s3 = inlined_call_operand.hbm [shape: f32[1,128], index: 3, kind: input, shape index: {}]
  %s4 = inlined_call_operand.hbm [shape: bf16[128,128], index: 4, kind: input, shape index: {}]
  %s5 = inlined_call_operand.hbm [shape: f32[1,128], index: 5, kind: input, shape index: {}]
  %s6 = inlined_call_operand.hbm [shape: bf16[128,128], index: 6, kind: input, shape index: {}]
  %s7 = inlined_call_operand.hbm [shape: f32[1,128], index: 7, kind: input, shape index: {}]
  %s8 = inlined_call_operand.hbm [shape: bf16[128,256], index: 8, kind: input, shape index: {}]
  %s9 = inlined_call_operand.vmem [shape: f32[1,256], index: 9, kind: input, shape index: {}]
  %s10 = inlined_call_operand.hbm [shape: bf16[256,256], index: 10, kind: input, shape index: {}]
  %s11 = inlined_call_operand.vmem [shape: f32[1,256], index: 11, kind: input, shape index: {}]
  %s12 = inlined_call_operand.vmem [shape: bf16[256,16], index: 12, kind: input, shape index: {}]
  %s13 = inlined_call_operand.vmem [shape: f32[1,16], index: 13, kind: input, shape index: {}]
  %s14 = inlined_call_operand.vmem [shape: bf16[8,128], index: 14, kind: input, shape index: {}]
  %s15 = inlined_call_operand.vmem [shape: f32[1,128], index: 15, kind: input, shape index: {}]
  %s16 = inlined_call_operand.hbm [shape: bf16[128,128], index: 16, kind: input, shape index: {}]
  %s17 = inlined_call_operand.vmem [shape: f32[1,128], index: 17, kind: input, shape index: {}]
  %s18 = inlined_call_operand.hbm [shape: bf16[128,128], index: 18, kind: input, shape index: {}]
  %s19 = inlined_call_operand.vmem [shape: f32[1,128], index: 19, kind: input, shape index: {}]
  %s20 = inlined_call_operand.hbm [shape: bf16[128,256], index: 20, kind: input, shape index: {}]
  %s21 = inlined_call_operand.vmem [shape: f32[1,256], index: 21, kind: input, shape index: {}]
  %s22 = inlined_call_operand.hbm [shape: f32[8,256], index: 22, kind: output, shape index: {0}]
  %s23 = inlined_call_operand.vmem [shape: f32[8,16], index: 23, kind: output, shape index: {1}]
  %24 = xla_tuple %s22, %s23
  %s25 = sld [smem:[#allocation0]]
  $region146: #{vae_forward_pallas.1} parent=0
    _
  %s27 = ssub.s32 1, %s25
  %s28 = scalar_select 0, %s27, %s25
  $region1: #{vae_forward_pallas.1} parent=0
    #allocation2 [shape = 'u8[512]{0}', space=vmem, size = 0x400, scoped, tag = 'input window, operand 3, single buffered']
    #allocation3 [shape = 's32[1]{0}', space=sflag, size = 0x4, scoped, tag = 'scoped memory for vae_forward_pallas.1']
    #allocation4 [shape = 's32[1]{0}', space=sflag, size = 0x4, scoped, tag = 'scoped memory for vae_forward_pallas.1']
    #allocation5 [shape = 'u8[32768]{0}', space=vmem, size = 0x8000, scoped, tag = 'input window, operand 4, single buffered']
    #allocation6 [shape = 's32[1]{0}', space=sflag, size = 0x4, scoped, tag = 'scoped memory for vae_forward_pallas.1']
    #allocation7 [shape = 'u8[512]{0}', space=vmem, size = 0x400, scoped, tag = 'input window, operand 5, single buffered']
    #allocation8 [shape = 'u8[32768]{0}', space=vmem, size = 0x8000, scoped, tag = 'input window, operand 6, single buffered']
    #allocation9 [shape = 's32[1]{0}', space=sflag, size = 0x4, scoped, tag = 'scoped memory for vae_forward_pallas.1']
    #allocation10 [shape = 'u8[512]{0}', space=vmem, size = 0x400, scoped, tag = 'input window, operand 7, single buffered']
    #allocation11 [shape = 'u8[65536]{0}', space=vmem, size = 0x10000, scoped, tag = 'input window, operand 8, single buffered']
    #allocation12 [shape = 's32[1]{0}', space=sflag, size = 0x4, scoped, tag = 'scoped memory for vae_forward_pallas.1']
    #allocation13 [shape = 'u8[131072]{0}', space=vmem, size = 0x20000, scoped, tag = 'input window, operand 10, single buffered']
    #allocation14 [shape = 'u8[32768]{0}', space=vmem, size = 0x8000, scoped, tag = 'input window, operand 16, single buffered']
    #allocation15 [shape = 's32[1]{0}', space=sflag, size = 0x4, scoped, tag = 'scoped memory for vae_forward_pallas.1']
    #allocation16 [shape = 'u8[32768]{0}', space=vmem, size = 0x8000, scoped, tag = 'input window, operand 18, single buffered']
    #allocation17 [shape = 'u8[65536]{0}', space=vmem, size = 0x10000, scoped, tag = 'input window, operand 20, single buffered']
    #allocation18 [shape = 's32[1]{0}', space=sflag, size = 0x4, scoped, tag = 'scoped memory for vae_forward_pallas.1']
    #allocation19 [shape = 'u8[8192]{0}', space=vmem, size = 0x2000, scoped, tag = 'output window, operand 0, single buffered']
    %29 = vsyncpa [#allocation3], 0
    %30 = vsyncpa [#allocation6], 0
    %31 = vsyncpa [#allocation9], 0
    %32 = vsyncpa [#allocation12], 0
    %33 = vsyncpa [#allocation15], 0
    %34 = vsyncpa [#allocation18], 0
    %35 = vsyncpa [#allocation4], 0
    // Predicated region
    $region2: #{vae_forward_pallas.1} parent=1 // pred_check
      _
    $region3: #{vae_forward_pallas.1} parent=1 // pred_check_branch
      %37 = sbr.rel (0) target = $region5
    $region4: #{vae_forward_pallas.1} parent=1 // pred_region
      _
    $region5: #{vae_forward_pallas.1} parent=1 // pred_fallthru
      _
    // Predicated region
    $region6: #{vae_forward_pallas.1} parent=1 // pred_check
      _
    $region7: #{vae_forward_pallas.1} parent=1 // pred_check_branch
      %39 = sbr.rel (0) target = $region9
    $region8: #{vae_forward_pallas.1} parent=1 // pred_region
      _
    $region9: #{vae_forward_pallas.1} parent=1 // pred_fallthru
      _
    // Predicated region
    $region10: #{vae_forward_pallas.1} parent=1 // pred_check
      _
    $region11: #{vae_forward_pallas.1} parent=1 // pred_check_branch
      %41 = sbr.rel (0) target = $region13
    $region12: #{vae_forward_pallas.1} parent=1 // pred_region
      _
    $region13: #{vae_forward_pallas.1} parent=1 // pred_fallthru
      _
    // Predicated region
    $region14: #{vae_forward_pallas.1} parent=1 // pred_check
      _
    $region15: #{vae_forward_pallas.1} parent=1 // pred_check_branch
      %43 = sbr.rel (0) target = $region17
    $region16: #{vae_forward_pallas.1} parent=1 // pred_region
      %s45 = ssub.s32 16, 16
      %46 = vsyncadd [#allocation3], %s45
      %s48 = sshll.u32 [#allocation2], 4
      %s49 = int_to_ptr.vmem [resolvable:$true] %s48
      %51 = dma.hbm_to_vmem [thread:$0]  %s3, 16, %s49, [#allocation3]
    $region17: #{vae_forward_pallas.1} parent=1 // pred_fallthru
      _
    // Predicated region
    $region18: #{vae_forward_pallas.1} parent=1 // pred_check
      _
    $region19: #{vae_forward_pallas.1} parent=1 // pred_check_branch
      %53 = sbr.rel (0) target = $region21
    $region20: #{vae_forward_pallas.1} parent=1 // pred_region
      %s55 = ssub.s32 1024, 1024
      %56 = vsyncadd [#allocation6], %s55
      %s57 = sshll.u32 [#allocation5], 4
      %s58 = int_to_ptr.vmem [resolvable:$true] %s57
      %63 = dma.hbm_to_vmem [thread:$0]  %s4, 1024, %s58, [#allocation6], 64, 64, 4
    $region21: #{vae_forward_pallas.1} parent=1 // pred_fallthru
      _
    // Predicated region
    $region22: #{vae_forward_pallas.1} parent=1 // pred_check
      _
    $region23: #{vae_forward_pallas.1} parent=1 // pred_check_branch
      %65 = sbr.rel (0) target = $region25
    $region24: #{vae_forward_pallas.1} parent=1 // pred_region
      %s67 = ssub.s32 16, 16
      %68 = vsyncadd [#allocation6], %s67
      %s70 = sshll.u32 [#allocation7], 4
      %s71 = int_to_ptr.vmem [resolvable:$true] %s70
      %73 = dma.hbm_to_vmem [thread:$0]  %s5, 16, %s71, [#allocation6]
    $region25: #{vae_forward_pallas.1} parent=1 // pred_fallthru
      _
    // Predicated region
    $region26: #{vae_forward_pallas.1} parent=1 // pred_check
      _
    $region27: #{vae_forward_pallas.1} parent=1 // pred_check_branch
      %75 = sbr.rel (0) target = $region29
    $region28: #{vae_forward_pallas.1} parent=1 // pred_region
      %s77 = ssub.s32 1024, 1024
      %78 = vsyncadd [#allocation9], %s77
      %s79 = sshll.u32 [#allocation8], 4
      %s80 = int_to_ptr.vmem [resolvable:$true] %s79
      %85 = dma.hbm_to_vmem [thread:$0]  %s6, 1024, %s80, [#allocation9], 64, 64, 4
    $region29: #{vae_forward_pallas.1} parent=1 // pred_fallthru
      _
    // Predicated region
    $region30: #{vae_forward_pallas.1} parent=1 // pred_check
      _
    $region31: #{vae_forward_pallas.1} parent=1 // pred_check_branch
      %87 = sbr.rel (0) target = $region33
    $region32: #{vae_forward_pallas.1} parent=1 // pred_region
      %s89 = ssub.s32 16, 16
      %90 = vsyncadd [#allocation9], %s89
      %s92 = sshll.u32 [#allocation10], 4
      %s93 = int_to_ptr.vmem [resolvable:$true] %s92
      %95 = dma.hbm_to_vmem [thread:$0]  %s7, 16, %s93, [#allocation9]
    $region33: #{vae_forward_pallas.1} parent=1 // pred_fallthru
      _
    // Predicated region
    $region34: #{vae_forward_pallas.1} parent=1 // pred_check
      _
    $region35: #{vae_forward_pallas.1} parent=1 // pred_check_branch
      %97 = sbr.rel (0) target = $region37
    $region36: #{vae_forward_pallas.1} parent=1 // pred_region
      %s99 = ssub.s32 2048, 2048
      %100 = vsyncadd [#allocation12], %s99
      %s101 = sshll.u32 [#allocation11], 4
      %s102 = int_to_ptr.vmem [resolvable:$true] %s101
      %107 = dma.hbm_to_vmem [thread:$0]  %s8, 2048, %s102, [#allocation12], 128, 128, 8
    $region37: #{vae_forward_pallas.1} parent=1 // pred_fallthru
      _
    // Predicated region
    $region38: #{vae_forward_pallas.1} parent=1 // pred_check
      _
    $region39: #{vae_forward_pallas.1} parent=1 // pred_check_branch
      %109 = sbr.rel (0) target = $region41
    $region40: #{vae_forward_pallas.1} parent=1 // pred_region
      _
    $region41: #{vae_forward_pallas.1} parent=1 // pred_fallthru
      _
    // Predicated region
    $region42: #{vae_forward_pallas.1} parent=1 // pred_check
      _
    $region43: #{vae_forward_pallas.1} parent=1 // pred_check_branch
      %111 = sbr.rel (0) target = $region45
    $region44: #{vae_forward_pallas.1} parent=1 // pred_region
      %s113 = ssub.s32 4096, 4096
      %114 = vsyncadd [#allocation12], %s113
      %s115 = sshll.u32 [#allocation13], 4
      %s116 = int_to_ptr.vmem [resolvable:$true] %s115
      %121 = dma.hbm_to_vmem [thread:$0]  %s10, 4096, %s116, [#allocation12], 128, 128, 8
    $region45: #{vae_forward_pallas.1} parent=1 // pred_fallthru
      _
    // Predicated region
    $region46: #{vae_forward_pallas.1} parent=1 // pred_check
      _
    $region47: #{vae_forward_pallas.1} parent=1 // pred_check_branch
      %123 = sbr.rel (0) target = $region49
    $region48: #{vae_forward_pallas.1} parent=1 // pred_region
      _
    $region49: #{vae_forward_pallas.1} parent=1 // pred_fallthru
      _
    // Predicated region
    $region50: #{vae_forward_pallas.1} parent=1 // pred_check
      _
    $region51: #{vae_forward_pallas.1} parent=1 // pred_check_branch
      %125 = sbr.rel (0) target = $region53
    $region52: #{vae_forward_pallas.1} parent=1 // pred_region
      _
    $region53: #{vae_forward_pallas.1} parent=1 // pred_fallthru
      _
    // Predicated region
    $region54: #{vae_forward_pallas.1} parent=1 // pred_check
      _
    $region55: #{vae_forward_pallas.1} parent=1 // pred_check_branch
      %127 = sbr.rel (0) target = $region57
    $region56: #{vae_forward_pallas.1} parent=1 // pred_region
      _
    $region57: #{vae_forward_pallas.1} parent=1 // pred_fallthru
      _
    // Predicated region
    $region58: #{vae_forward_pallas.1} parent=1 // pred_check
      _
    $region59: #{vae_forward_pallas.1} parent=1 // pred_check_branch
      %129 = sbr.rel (0) target = $region61
    $region60: #{vae_forward_pallas.1} parent=1 // pred_region
      _
    $region61: #{vae_forward_pallas.1} parent=1 // pred_fallthru
      _
    // Predicated region
    $region62: #{vae_forward_pallas.1} parent=1 // pred_check
      _
    $region63: #{vae_forward_pallas.1} parent=1 // pred_check_branch
      %131 = sbr.rel (0) target = $region65
    $region64: #{vae_forward_pallas.1} parent=1 // pred_region
      _
    $region65: #{vae_forward_pallas.1} parent=1 // pred_fallthru
      _
    // Predicated region
    $region66: #{vae_forward_pallas.1} parent=1 // pred_check
      _
    $region67: #{vae_forward_pallas.1} parent=1 // pred_check_branch
      %133 = sbr.rel (0) target = $region69
    $region68: #{vae_forward_pallas.1} parent=1 // pred_region
      %s135 = ssub.s32 1024, 1024
      %136 = vsyncadd [#allocation15], %s135
      %s137 = sshll.u32 [#allocation14], 4
      %s138 = int_to_ptr.vmem [resolvable:$true] %s137
      %143 = dma.hbm_to_vmem [thread:$0]  %s16, 1024, %s138, [#allocation15], 64, 64, 4
    $region69: #{vae_forward_pallas.1} parent=1 // pred_fallthru
      _
    // Predicated region
    $region70: #{vae_forward_pallas.1} parent=1 // pred_check
      _
    $region71: #{vae_forward_pallas.1} parent=1 // pred_check_branch
      %145 = sbr.rel (0) target = $region73
    $region72: #{vae_forward_pallas.1} parent=1 // pred_region
      _
    $region73: #{vae_forward_pallas.1} parent=1 // pred_fallthru
      _
    // Predicated region
    $region74: #{vae_forward_pallas.1} parent=1 // pred_check
      _
    $region75: #{vae_forward_pallas.1} parent=1 // pred_check_branch
      %147 = sbr.rel (0) target = $region77
    $region76: #{vae_forward_pallas.1} parent=1 // pred_region
      %s149 = ssub.s32 1024, 1024
      %150 = vsyncadd [#allocation15], %s149
      %s151 = sshll.u32 [#allocation16], 4
      %s152 = int_to_ptr.vmem [resolvable:$true] %s151
      %157 = dma.hbm_to_vmem [thread:$0]  %s18, 1024, %s152, [#allocation15], 64, 64, 4
    $region77: #{vae_forward_pallas.1} parent=1 // pred_fallthru
      _
    // Predicated region
    $region78: #{vae_forward_pallas.1} parent=1 // pred_check
      _
    $region79: #{vae_forward_pallas.1} parent=1 // pred_check_branch
      %159 = sbr.rel (0) target = $region81
    $region80: #{vae_forward_pallas.1} parent=1 // pred_region
      _
    $region81: #{vae_forward_pallas.1} parent=1 // pred_fallthru
      _
    // Predicated region
    $region82: #{vae_forward_pallas.1} parent=1 // pred_check
      _
    $region83: #{vae_forward_pallas.1} parent=1 // pred_check_branch
      %161 = sbr.rel (0) target = $region85
    $region84: #{vae_forward_pallas.1} parent=1 // pred_region
      %s163 = ssub.s32 2048, 2048
      %164 = vsyncadd [#allocation18], %s163
      %s165 = sshll.u32 [#allocation17], 4
      %s166 = int_to_ptr.vmem [resolvable:$true] %s165
      %171 = dma.hbm_to_vmem [thread:$0]  %s20, 2048, %s166, [#allocation18], 128, 128, 8
    $region85: #{vae_forward_pallas.1} parent=1 // pred_fallthru
      _
    // Predicated region
    $region86: #{vae_forward_pallas.1} parent=1 // pred_check
      _
    $region87: #{vae_forward_pallas.1} parent=1 // pred_check_branch
      %173 = sbr.rel (0) target = $region89
    $region88: #{vae_forward_pallas.1} parent=1 // pred_region
      _
    $region89: #{vae_forward_pallas.1} parent=1 // pred_fallthru
      _
    // Predicated region
    $region90: #{vae_forward_pallas.1} parent=1 // pred_check
      _
    $region91: #{vae_forward_pallas.1} parent=1 // pred_check_branch
      %175 = sbr.rel (0) target = $region93
    $region92: #{vae_forward_pallas.1} parent=1 // pred_region
      %176 = dma.done [#allocation3], 16
    $region93: #{vae_forward_pallas.1} parent=1 // pred_fallthru
      _
    // Predicated region
    $region94: #{vae_forward_pallas.1} parent=1 // pred_check
      _
    $region95: #{vae_forward_pallas.1} parent=1 // pred_check_branch
      %178 = sbr.rel (0) target = $region97
    $region96: #{vae_forward_pallas.1} parent=1 // pred_region
      %179 = dma.done [#allocation6], 1024
    $region97: #{vae_forward_pallas.1} parent=1 // pred_fallthru
      _
    // Predicated region
    $region98: #{vae_forward_pallas.1} parent=1 // pred_check
      _
    $region99: #{vae_forward_pallas.1} parent=1 // pred_check_branch
      %181 = sbr.rel (0) target = $region101
    $region100: #{vae_forward_pallas.1} parent=1 // pred_region
      %182 = dma.done [#allocation6], 16
    $region101: #{vae_forward_pallas.1} parent=1 // pred_fallthru
      _
    // Predicated region
    $region102: #{vae_forward_pallas.1} parent=1 // pred_check
      _
    $region103: #{vae_forward_pallas.1} parent=1 // pred_check_branch
      %184 = sbr.rel (0) target = $region105
    $region104: #{vae_forward_pallas.1} parent=1 // pred_region
      %185 = dma.done [#allocation9], 1024
    $region105: #{vae_forward_pallas.1} parent=1 // pred_fallthru
      _
    // Predicated region
    $region106: #{vae_forward_pallas.1} parent=1 // pred_check
      _
    $region107: #{vae_forward_pallas.1} parent=1 // pred_check_branch
      %187 = sbr.rel (0) target = $region109
    $region108: #{vae_forward_pallas.1} parent=1 // pred_region
      %188 = dma.done [#allocation9], 16
    $region109: #{vae_forward_pallas.1} parent=1 // pred_fallthru
      _
    // Predicated region
    $region110: #{vae_forward_pallas.1} parent=1 // pred_check
      _
    $region111: #{vae_forward_pallas.1} parent=1 // pred_check_branch
      %190 = sbr.rel (0) target = $region113
    $region112: #{vae_forward_pallas.1} parent=1 // pred_region
      %191 = dma.done [#allocation12], 2048
    $region113: #{vae_forward_pallas.1} parent=1 // pred_fallthru
      _
    // Predicated region
    $region114: #{vae_forward_pallas.1} parent=1 // pred_check
      _
    $region115: #{vae_forward_pallas.1} parent=1 // pred_check_branch
      %193 = sbr.rel (0) target = $region117
    $region116: #{vae_forward_pallas.1} parent=1 // pred_region
      %194 = dma.done [#allocation12], 4096
    $region117: #{vae_forward_pallas.1} parent=1 // pred_fallthru
      _
    // Predicated region
    $region118: #{vae_forward_pallas.1} parent=1 // pred_check
      _
    $region119: #{vae_forward_pallas.1} parent=1 // pred_check_branch
      %196 = sbr.rel (0) target = $region121
    $region120: #{vae_forward_pallas.1} parent=1 // pred_region
      %197 = dma.done [#allocation15], 1024
    $region121: #{vae_forward_pallas.1} parent=1 // pred_fallthru
      _
    // Predicated region
    $region122: #{vae_forward_pallas.1} parent=1 // pred_check
      _
    $region123: #{vae_forward_pallas.1} parent=1 // pred_check_branch
      %199 = sbr.rel (0) target = $region125
    $region124: #{vae_forward_pallas.1} parent=1 // pred_region
      %200 = dma.done [#allocation15], 1024
    $region125: #{vae_forward_pallas.1} parent=1 // pred_fallthru
      _
    // Predicated region
    $region126: #{vae_forward_pallas.1} parent=1 // pred_check
      _
    $region127: #{vae_forward_pallas.1} parent=1 // pred_check_branch
      %202 = sbr.rel (0) target = $region129
    $region128: #{vae_forward_pallas.1} parent=1 // pred_region
      %203 = dma.done [#allocation18], 2048
    $region129: #{vae_forward_pallas.1} parent=1 // pred_fallthru
      _
    %v205 = vld [vmem:[%s0] sm:$0xff]
    %v206 = vld [vmem:[%s0 + $0x8] sm:$0xff]
    %v207 = vpack.c.bf16 %v205, %v205
    %v208 = vpack.c.bf16 %v206, %v206
    %v209 = vld [vmem:[%s2] sm:$0xf]
    %v210 = vld [vmem:[%s2 + $0x4] sm:$0xf]
    %v211 = vld [vmem:[%s2 + $0x8] sm:$0xf]
    %v212 = vld [vmem:[%s2 + $0xc] sm:$0xf]
    %v213 = vld [vmem:[%s2 + $0x10] sm:$0xf]
    %v214 = vld [vmem:[%s2 + $0x14] sm:$0xf]
    %v215 = vld [vmem:[%s2 + $0x18] sm:$0xf]
    %v216 = vld [vmem:[%s2 + $0x1c] sm:$0xf]
    %v217 = vld [vmem:[%s2 + $0x20] sm:$0xf]
    %v218 = vld [vmem:[%s2 + $0x24] sm:$0xf]
    %v219 = vld [vmem:[%s2 + $0x28] sm:$0xf]
    %v220 = vld [vmem:[%s2 + $0x2c] sm:$0xf]
    %v221 = vld [vmem:[%s2 + $0x30] sm:$0xf]
    %v222 = vld [vmem:[%s2 + $0x34] sm:$0xf]
    %v223 = vld [vmem:[%s2 + $0x38] sm:$0xf]
    %v224 = vld [vmem:[%s2 + $0x3c] sm:$0xf]
    %v225 = vld [vmem:[%s2 + $0x40] sm:$0xf]
    %v226 = vld [vmem:[%s2 + $0x44] sm:$0xf]
    %v227 = vld [vmem:[%s2 + $0x48] sm:$0xf]
    %v228 = vld [vmem:[%s2 + $0x4c] sm:$0xf]
    %v229 = vld [vmem:[%s2 + $0x50] sm:$0xf]
    %v230 = vld [vmem:[%s2 + $0x54] sm:$0xf]
    %v231 = vld [vmem:[%s2 + $0x58] sm:$0xf]
    %v232 = vld [vmem:[%s2 + $0x5c] sm:$0xf]
    %v233 = vld [vmem:[%s2 + $0x60] sm:$0xf]
    %v234 = vld [vmem:[%s2 + $0x64] sm:$0xf]
    %v235 = vld [vmem:[%s2 + $0x68] sm:$0xf]
    %v236 = vld [vmem:[%s2 + $0x6c] sm:$0xf]
    %v237 = vld [vmem:[%s2 + $0x70] sm:$0xf]
    %v238 = vld [vmem:[%s2 + $0x74] sm:$0xf]
    %v239 = vld [vmem:[%s2 + $0x78] sm:$0xf]
    %v240 = vld [vmem:[%s2 + $0x7c] sm:$0xf]
    %v241 = vld [vmem:[#allocation2] sm:$0x1]
    %v243 = vlaneseq
    %v244 = vshrl.u32 %v243, 7
    %v245 = vsub.s32 0, %v244
    %v246 = vrot.slane %v241, %v245
    %v280 = vunpack.c.l.b16 %v209
    %v281 = vunpack.c.l.b16 %v210
    %v282 = vunpack.c.l.b16 %v211
    %v283 = vunpack.c.l.b16 %v212
    %v284 = vunpack.c.l.b16 %v213
    %v285 = vunpack.c.l.b16 %v214
    %v286 = vunpack.c.l.b16 %v215
    %v287 = vunpack.c.l.b16 %v216
    %v288 = vunpack.c.l.b16 %v217
    %v289 = vunpack.c.l.b16 %v218
    %v290 = vunpack.c.l.b16 %v219
    %v291 = vunpack.c.l.b16 %v220
    %v292 = vunpack.c.l.b16 %v221
    %v293 = vunpack.c.l.b16 %v222
    %v294 = vunpack.c.l.b16 %v223
    %v295 = vunpack.c.l.b16 %v224
    %v296 = vunpack.c.l.b16 %v225
    %v297 = vunpack.c.l.b16 %v226
    %v298 = vunpack.c.l.b16 %v227
    %v299 = vunpack.c.l.b16 %v228
    %v300 = vunpack.c.l.b16 %v229
    %v301 = vunpack.c.l.b16 %v230
    %v302 = vunpack.c.l.b16 %v231
    %v303 = vunpack.c.l.b16 %v232
    %v304 = vunpack.c.l.b16 %v233
    %v305 = vunpack.c.l.b16 %v234
    %v306 = vunpack.c.l.b16 %v235
    %v307 = vunpack.c.l.b16 %v236
    %v308 = vunpack.c.l.b16 %v237
    %v309 = vunpack.c.l.b16 %v238
    %v310 = vunpack.c.l.b16 %v239
    %v311 = vunpack.c.l.b16 %v240
    %v312 = vpack.c.b16 %v281, %v280
    %v313 = vpack.c.b16 %v283, %v282
    %v314 = vpack.c.b16 %v285, %v284
    %v315 = vpack.c.b16 %v287, %v286
    %v316 = vpack.c.b16 %v289, %v288
    %v317 = vpack.c.b16 %v291, %v290
    %v318 = vpack.c.b16 %v293, %v292
    %v319 = vpack.c.b16 %v295, %v294
    %v320 = vpack.c.b16 %v297, %v296
    %v321 = vpack.c.b16 %v299, %v298
    %v322 = vpack.c.b16 %v301, %v300
    %v323 = vpack.c.b16 %v303, %v302
    %v324 = vpack.c.b16 %v305, %v304
    %v325 = vpack.c.b16 %v307, %v306
    %v326 = vpack.c.b16 %v309, %v308
    %v327 = vpack.c.b16 %v311, %v310
    %344 = vmatprep.subr.bf16.mxu0 0
    %345 = vmatpush1.bf16.msra.mxu0 %v319
    %346 = vmatprep.subr.bf16.mxu0 0
    %347 = vmatpush1.bf16.msra.mxu0 %v318
    %348 = vmatprep.subr.bf16.mxu0 0
    %349 = vmatpush1.bf16.msra.mxu0 %v317
    %350 = vmatprep.subr.bf16.mxu0 0
    %351 = vmatpush1.bf16.msra.mxu0 %v316
    %352 = vmatprep.subr.bf16.mxu0 0
    %353 = vmatpush1.bf16.msra.mxu0 %v315
    %354 = vmatprep.subr.bf16.mxu0 0
    %355 = vmatpush1.bf16.msra.mxu0 %v314
    %356 = vmatprep.subr.bf16.mxu0 0
    %357 = vmatpush1.bf16.msra.mxu0 %v313
    %358 = vmatprep.subr.bf16.mxu0 0
    %359 = vmatpush1.bf16.msra.mxu0 %v312
    %360 = vmatprep.subr.bf16.mxu0 0
    %361 = vmatpush2.bf16.msra.mxu0 %v327
    %362 = vmatprep.subr.bf16.mxu0 0
    %363 = vmatpush2.bf16.msra.mxu0 %v326
    %364 = vmatprep.subr.bf16.mxu0 0
    %365 = vmatpush2.bf16.msra.mxu0 %v325
    %366 = vmatprep.subr.bf16.mxu0 0
    %367 = vmatpush2.bf16.msra.mxu0 %v324
    %368 = vmatprep.subr.bf16.mxu0 0
    %369 = vmatpush2.bf16.msra.mxu0 %v323
    %370 = vmatprep.subr.bf16.mxu0 0
    %371 = vmatpush2.bf16.msra.mxu0 %v322
    %372 = vmatprep.subr.bf16.mxu0 0
    %373 = vmatpush2.bf16.msra.mxu0 %v321
    %374 = vmatprep.subr.bf16.mxu0 0
    %375 = vmatpush2.bf16.msra.mxu0 %v320
    %376 = vmatprep.mubr.bf16.mxu0 %v208
    %377 = vmatmul.mubr.bf16.gmra.mxu0 %v207
    %v378 = vpop.f32.mrf.mxu0
    %v379 = vadd.f32 %v246, %v378
    %v380 = vpop.f32.mrf.mxu0
    %v381 = vpop.f32.mrf.mxu0
    %v382 = vpop.f32.mrf.mxu0
    %383 = vdwg.mxu0
    %v384 = vmul.f32 %v379, 0.2
    %v385 = vmax.f32 %v379, %v384
    %v386 = vpack.c.bf16 %v385, %v385
    %v387 = vld [vmem:[#allocation5] sm:$0xf]
    %v388 = vld [vmem:[#allocation5 + $0x4] sm:$0xf]
    %v389 = vld [vmem:[#allocation5 + $0x8] sm:$0xf]
    %v390 = vld [vmem:[#allocation5 + $0xc] sm:$0xf]
    %v391 = vld [vmem:[#allocation5 + $0x10] sm:$0xf]
    %v392 = vld [vmem:[#allocation5 + $0x14] sm:$0xf]
    %v393 = vld [vmem:[#allocation5 + $0x18] sm:$0xf]
    %v394 = vld [vmem:[#allocation5 + $0x1c] sm:$0xf]
    %v395 = vld [vmem:[#allocation5 + $0x20] sm:$0xf]
    %v396 = vld [vmem:[#allocation5 + $0x24] sm:$0xf]
    %v397 = vld [vmem:[#allocation5 + $0x28] sm:$0xf]
    %v398 = vld [vmem:[#allocation5 + $0x2c] sm:$0xf]
    %v399 = vld [vmem:[#allocation5 + $0x30] sm:$0xf]
    %v400 = vld [vmem:[#allocation5 + $0x34] sm:$0xf]
    %v401 = vld [vmem:[#allocation5 + $0x38] sm:$0xf]
    %v402 = vld [vmem:[#allocation5 + $0x3c] sm:$0xf]
    %v403 = vld [vmem:[#allocation7] sm:$0x1]
    %v405 = vlaneseq
    %v406 = vshrl.u32 %v405, 7
    %v407 = vsub.s32 0, %v406
    %v408 = vrot.slane %v403, %v407
    %v426 = vunpack.c.l.b16 %v387
    %v427 = vunpack.c.l.b16 %v388
    %v428 = vunpack.c.l.b16 %v389
    %v429 = vunpack.c.l.b16 %v390
    %v430 = vunpack.c.l.b16 %v391
    %v431 = vunpack.c.l.b16 %v392
    %v432 = vunpack.c.l.b16 %v393
    %v433 = vunpack.c.l.b16 %v394
    %v434 = vunpack.c.l.b16 %v395
    %v435 = vunpack.c.l.b16 %v396
    %v436 = vunpack.c.l.b16 %v397
    %v437 = vunpack.c.l.b16 %v398
    %v438 = vunpack.c.l.b16 %v399
    %v439 = vunpack.c.l.b16 %v400
    %v440 = vunpack.c.l.b16 %v401
    %v441 = vunpack.c.l.b16 %v402
    %v442 = vpack.c.b16 %v427, %v426
    %v443 = vpack.c.b16 %v429, %v428
    %v444 = vpack.c.b16 %v431, %v430
    %v445 = vpack.c.b16 %v433, %v432
    %v446 = vpack.c.b16 %v435, %v434
    %v447 = vpack.c.b16 %v437, %v436
    %v448 = vpack.c.b16 %v439, %v438
    %v449 = vpack.c.b16 %v441, %v440
    %458 = vmatprep.subr.bf16.mxu0 0
    %459 = vmatpush1.bf16.msra.mxu0 %v449
    %460 = vmatprep.subr.bf16.mxu0 0
    %461 = vmatpush1.bf16.msra.mxu0 %v448
    %462 = vmatprep.subr.bf16.mxu0 0
    %463 = vmatpush1.bf16.msra.mxu0 %v447
    %464 = vmatprep.subr.bf16.mxu0 0
    %465 = vmatpush1.bf16.msra.mxu0 %v446
    %466 = vmatprep.subr.bf16.mxu0 0
    %467 = vmatpush1.bf16.msra.mxu0 %v445
    %468 = vmatprep.subr.bf16.mxu0 0
    %469 = vmatpush1.bf16.msra.mxu0 %v444
    %470 = vmatprep.subr.bf16.mxu0 0
    %471 = vmatpush1.bf16.msra.mxu0 %v443
    %472 = vmatprep.subr.bf16.mxu0 0
    %473 = vmatpush1.bf16.msra.mxu0 %v442
    %474 = vmatprep.subr.bf16.mxu0 0
    %475 = vmatpush2.bf16.msra.mxu0 0
    %476 = vmatprep.subr.bf16.mxu0 0
    %477 = vmatpush2.bf16.msra.mxu0 0
    %478 = vmatprep.subr.bf16.mxu0 0
    %479 = vmatpush2.bf16.msra.mxu0 0
    %480 = vmatprep.subr.bf16.mxu0 0
    %481 = vmatpush2.bf16.msra.mxu0 0
    %482 = vmatprep.subr.bf16.mxu0 0
    %483 = vmatpush2.bf16.msra.mxu0 0
    %484 = vmatprep.subr.bf16.mxu0 0
    %485 = vmatpush2.bf16.msra.mxu0 0
    %486 = vmatprep.subr.bf16.mxu0 0
    %487 = vmatpush2.bf16.msra.mxu0 0
    %488 = vmatprep.subr.bf16.mxu0 0
    %489 = vmatpush2.bf16.msra.mxu0 0
    %490 = vmatprep.mubr.bf16.mxu0 0
    %491 = vmatmul.mubr.bf16.gmra.mxu0 %v386
    %v492 = vpop.f32.mrf.mxu0
    %v493 = vadd.f32 %v408, %v492
    %v494 = vpop.f32.mrf.mxu0
    %v495 = vpop.f32.mrf.mxu0
    %v496 = vpop.f32.mrf.mxu0
    %497 = vdwg.mxu0
    %v498 = vmul.f32 %v493, 0.2
    %v499 = vmax.f32 %v493, %v498
    %v500 = vpack.c.bf16 %v499, %v499
    %v501 = vld [vmem:[#allocation8] sm:$0xf]
    %v502 = vld [vmem:[#allocation8 + $0x4] sm:$0xf]
    %v503 = vld [vmem:[#allocation8 + $0x8] sm:$0xf]
    %v504 = vld [vmem:[#allocation8 + $0xc] sm:$0xf]
    %v505 = vld [vmem:[#allocation8 + $0x10] sm:$0xf]
    %v506 = vld [vmem:[#allocation8 + $0x14] sm:$0xf]
    %v507 = vld [vmem:[#allocation8 + $0x18] sm:$0xf]
    %v508 = vld [vmem:[#allocation8 + $0x1c] sm:$0xf]
    %v509 = vld [vmem:[#allocation8 + $0x20] sm:$0xf]
    %v510 = vld [vmem:[#allocation8 + $0x24] sm:$0xf]
    %v511 = vld [vmem:[#allocation8 + $0x28] sm:$0xf]
    %v512 = vld [vmem:[#allocation8 + $0x2c] sm:$0xf]
    %v513 = vld [vmem:[#allocation8 + $0x30] sm:$0xf]
    %v514 = vld [vmem:[#allocation8 + $0x34] sm:$0xf]
    %v515 = vld [vmem:[#allocation8 + $0x38] sm:$0xf]
    %v516 = vld [vmem:[#allocation8 + $0x3c] sm:$0xf]
    %v517 = vld [vmem:[#allocation10] sm:$0x1]
    %v519 = vlaneseq
    %v520 = vshrl.u32 %v519, 7
    %v521 = vsub.s32 0, %v520
    %v522 = vrot.slane %v517, %v521
    %v540 = vunpack.c.l.b16 %v501
    %v541 = vunpack.c.l.b16 %v502
    %v542 = vunpack.c.l.b16 %v503
    %v543 = vunpack.c.l.b16 %v504
    %v544 = vunpack.c.l.b16 %v505
    %v545 = vunpack.c.l.b16 %v506
    %v546 = vunpack.c.l.b16 %v507
    %v547 = vunpack.c.l.b16 %v508
    %v548 = vunpack.c.l.b16 %v509
    %v549 = vunpack.c.l.b16 %v510
    %v550 = vunpack.c.l.b16 %v511
    %v551 = vunpack.c.l.b16 %v512
    %v552 = vunpack.c.l.b16 %v513
    %v553 = vunpack.c.l.b16 %v514
    %v554 = vunpack.c.l.b16 %v515
    %v555 = vunpack.c.l.b16 %v516
    %v556 = vpack.c.b16 %v541, %v540
    %v557 = vpack.c.b16 %v543, %v542
    %v558 = vpack.c.b16 %v545, %v544
    %v559 = vpack.c.b16 %v547, %v546
    %v560 = vpack.c.b16 %v549, %v548
    %v561 = vpack.c.b16 %v551, %v550
    %v562 = vpack.c.b16 %v553, %v552
    %v563 = vpack.c.b16 %v555, %v554
    %572 = vmatprep.subr.bf16.mxu0 0
    %573 = vmatpush1.bf16.msra.mxu0 %v563
    %574 = vmatprep.subr.bf16.mxu0 0
    %575 = vmatpush1.bf16.msra.mxu0 %v562
    %576 = vmatprep.subr.bf16.mxu0 0
    %577 = vmatpush1.bf16.msra.mxu0 %v561
    %578 = vmatprep.subr.bf16.mxu0 0
    %579 = vmatpush1.bf16.msra.mxu0 %v560
    %580 = vmatprep.subr.bf16.mxu0 0
    %581 = vmatpush1.bf16.msra.mxu0 %v559
    %582 = vmatprep.subr.bf16.mxu0 0
    %583 = vmatpush1.bf16.msra.mxu0 %v558
    %584 = vmatprep.subr.bf16.mxu0 0
    %585 = vmatpush1.bf16.msra.mxu0 %v557
    %586 = vmatprep.subr.bf16.mxu0 0
    %587 = vmatpush1.bf16.msra.mxu0 %v556
    %588 = vmatprep.subr.bf16.mxu0 0
    %589 = vmatpush2.bf16.msra.mxu0 0
    %590 = vmatprep.subr.bf16.mxu0 0
    %591 = vmatpush2.bf16.msra.mxu0 0
    %592 = vmatprep.subr.bf16.mxu0 0
    %593 = vmatpush2.bf16.msra.mxu0 0
    %594 = vmatprep.subr.bf16.mxu0 0
    %595 = vmatpush2.bf16.msra.mxu0 0
    %596 = vmatprep.subr.bf16.mxu0 0
    %597 = vmatpush2.bf16.msra.mxu0 0
    %598 = vmatprep.subr.bf16.mxu0 0
    %599 = vmatpush2.bf16.msra.mxu0 0
    %600 = vmatprep.subr.bf16.mxu0 0
    %601 = vmatpush2.bf16.msra.mxu0 0
    %602 = vmatprep.subr.bf16.mxu0 0
    %603 = vmatpush2.bf16.msra.mxu0 0
    %604 = vmatprep.mubr.bf16.mxu0 0
    %605 = vmatmul.mubr.bf16.gmra.mxu0 %v500
    %v606 = vpop.f32.mrf.mxu0
    %v607 = vadd.f32 %v522, %v606
    %v608 = vpop.f32.mrf.mxu0
    %v609 = vpop.f32.mrf.mxu0
    %v610 = vpop.f32.mrf.mxu0
    %611 = vdwg.mxu0
    %v612 = vmul.f32 %v607, 0.2
    %v613 = vmax.f32 %v607, %v612
    %v614 = vpack.c.bf16 %v613, %v613
    %v615 = vld [vmem:[#allocation11] sm:$0xff]
    %v616 = vld [vmem:[#allocation11 + $0x8] sm:$0xff]
    %v617 = vld [vmem:[#allocation11 + $0x10] sm:$0xff]
    %v618 = vld [vmem:[#allocation11 + $0x18] sm:$0xff]
    %v619 = vld [vmem:[#allocation11 + $0x20] sm:$0xff]
    %v620 = vld [vmem:[#allocation11 + $0x28] sm:$0xff]
    %v621 = vld [vmem:[#allocation11 + $0x30] sm:$0xff]
    %v622 = vld [vmem:[#allocation11 + $0x38] sm:$0xff]
    %v623 = vld [vmem:[#allocation11 + $0x40] sm:$0xff]
    %v624 = vld [vmem:[#allocation11 + $0x48] sm:$0xff]
    %v625 = vld [vmem:[#allocation11 + $0x50] sm:$0xff]
    %v626 = vld [vmem:[#allocation11 + $0x58] sm:$0xff]
    %v627 = vld [vmem:[#allocation11 + $0x60] sm:$0xff]
    %v628 = vld [vmem:[#allocation11 + $0x68] sm:$0xff]
    %v629 = vld [vmem:[#allocation11 + $0x70] sm:$0xff]
    %v630 = vld [vmem:[#allocation11 + $0x78] sm:$0xff]
    %v631 = vld [vmem:[%s9] sm:$0x3]
    %v633 = vlaneseq
    %v634 = vshrl.u32 %v633, 7
    %v635 = vsub.s32 0, %v634
    %v636 = vrot.slane %v631, %v635
    %v637 = vlaneseq
    %v638 = vshrl.u32 %v637, 7
    %v639 = vsub.s32 1, %v638
    %v640 = vrot.slane %v631, %v639
    %v659 = vunpack.c.l.b16 %v615
    %v660 = vunpack.c.h.b16 %v615
    %v661 = vunpack.c.l.b16 %v616
    %v662 = vunpack.c.h.b16 %v616
    %v663 = vunpack.c.l.b16 %v617
    %v664 = vunpack.c.h.b16 %v617
    %v665 = vunpack.c.l.b16 %v618
    %v666 = vunpack.c.h.b16 %v618
    %v667 = vunpack.c.l.b16 %v619
    %v668 = vunpack.c.h.b16 %v619
    %v669 = vunpack.c.l.b16 %v620
    %v670 = vunpack.c.h.b16 %v620
    %v671 = vunpack.c.l.b16 %v621
    %v672 = vunpack.c.h.b16 %v621
    %v673 = vunpack.c.l.b16 %v622
    %v674 = vunpack.c.h.b16 %v622
    %v675 = vunpack.c.l.b16 %v623
    %v676 = vunpack.c.h.b16 %v623
    %v677 = vunpack.c.l.b16 %v624
    %v678 = vunpack.c.h.b16 %v624
    %v679 = vunpack.c.l.b16 %v625
    %v680 = vunpack.c.h.b16 %v625
    %v681 = vunpack.c.l.b16 %v626
    %v682 = vunpack.c.h.b16 %v626
    %v683 = vunpack.c.l.b16 %v627
    %v684 = vunpack.c.h.b16 %v627
    %v685 = vunpack.c.l.b16 %v628
    %v686 = vunpack.c.h.b16 %v628
    %v687 = vunpack.c.l.b16 %v629
    %v688 = vunpack.c.h.b16 %v629
    %v689 = vunpack.c.l.b16 %v630
    %v690 = vunpack.c.h.b16 %v630
    %v691 = vpack.c.b16 %v661, %v659
    %v692 = vpack.c.b16 %v662, %v660
    %v693 = vpack.c.b16 %v665, %v663
    %v694 = vpack.c.b16 %v666, %v664
    %v695 = vpack.c.b16 %v669, %v667
    %v696 = vpack.c.b16 %v670, %v668
    %v697 = vpack.c.b16 %v673, %v671
    %v698 = vpack.c.b16 %v674, %v672
    %v699 = vpack.c.b16 %v677, %v675
    %v700 = vpack.c.b16 %v678, %v676
    %v701 = vpack.c.b16 %v681, %v679
    %v702 = vpack.c.b16 %v682, %v680
    %v703 = vpack.c.b16 %v685, %v683
    %v704 = vpack.c.b16 %v686, %v684
    %v705 = vpack.c.b16 %v689, %v687
    %v706 = vpack.c.b16 %v690, %v688
    %723 = vmatprep.subr.bf16.mxu0 %v706
    %724 = vmatpush1.bf16.msra.mxu0 %v705
    %725 = vmatprep.subr.bf16.mxu0 %v704
    %726 = vmatpush1.bf16.msra.mxu0 %v703
    %727 = vmatprep.subr.bf16.mxu0 %v702
    %728 = vmatpush1.bf16.msra.mxu0 %v701
    %729 = vmatprep.subr.bf16.mxu0 %v700
    %730 = vmatpush1.bf16.msra.mxu0 %v699
    %731 = vmatprep.subr.bf16.mxu0 %v698
    %732 = vmatpush1.bf16.msra.mxu0 %v697
    %733 = vmatprep.subr.bf16.mxu0 %v696
    %734 = vmatpush1.bf16.msra.mxu0 %v695
    %735 = vmatprep.subr.bf16.mxu0 %v694
    %736 = vmatpush1.bf16.msra.mxu0 %v693
    %737 = vmatprep.subr.bf16.mxu0 %v692
    %738 = vmatpush1.bf16.msra.mxu0 %v691
    %739 = vmatprep.subr.bf16.mxu0 0
    %740 = vmatpush2.bf16.msra.mxu0 0
    %741 = vmatprep.subr.bf16.mxu0 0
    %742 = vmatpush2.bf16.msra.mxu0 0
    %743 = vmatprep.subr.bf16.mxu0 0
    %744 = vmatpush2.bf16.msra.mxu0 0
    %745 = vmatprep.subr.bf16.mxu0 0
    %746 = vmatpush2.bf16.msra.mxu0 0
    %747 = vmatprep.subr.bf16.mxu0 0
    %748 = vmatpush2.bf16.msra.mxu0 0
    %749 = vmatprep.subr.bf16.mxu0 0
    %750 = vmatpush2.bf16.msra.mxu0 0
    %751 = vmatprep.subr.bf16.mxu0 0
    %752 = vmatpush2.bf16.msra.mxu0 0
    %753 = vmatprep.subr.bf16.mxu0 0
    %754 = vmatpush2.bf16.msra.mxu0 0
    %755 = vmatprep.mubr.bf16.mxu0 0
    %756 = vmatmul.mubr.bf16.gmra.mxu0 %v614
    %v757 = vpop.f32.mrf.mxu0
    %v758 = vadd.f32 %v636, %v757
    %v759 = vpop.f32.mrf.mxu0
    %v760 = vadd.f32 %v640, %v759
    %v761 = vpop.f32.mrf.mxu0
    %v762 = vpop.f32.mrf.mxu0
    %763 = vdwg.mxu0
    %v764 = vmul.f32 %v758, 0.2
    %v765 = vmul.f32 %v760, 0.2
    %v766 = vmax.f32 %v758, %v764
    %v767 = vmax.f32 %v760, %v765
    %v768 = vpack.c.bf16 %v766, %v766
    %v769 = vpack.c.bf16 %v767, %v767
    %v770 = vld [vmem:[#allocation13] sm:$0xff]
    %v771 = vld [vmem:[#allocation13 + $0x8] sm:$0xff]
    %v772 = vld [vmem:[#allocation13 + $0x10] sm:$0xff]
    %v773 = vld [vmem:[#allocation13 + $0x18] sm:$0xff]
    %v774 = vld [vmem:[#allocation13 + $0x20] sm:$0xff]
    %v775 = vld [vmem:[#allocation13 + $0x28] sm:$0xff]
    %v776 = vld [vmem:[#allocation13 + $0x30] sm:$0xff]
    %v777 = vld [vmem:[#allocation13 + $0x38] sm:$0xff]
    %v778 = vld [vmem:[#allocation13 + $0x40] sm:$0xff]
    %v779 = vld [vmem:[#allocation13 + $0x48] sm:$0xff]
    %v780 = vld [vmem:[#allocation13 + $0x50] sm:$0xff]
    %v781 = vld [vmem:[#allocation13 + $0x58] sm:$0xff]
    %v782 = vld [vmem:[#allocation13 + $0x60] sm:$0xff]
    %v783 = vld [vmem:[#allocation13 + $0x68] sm:$0xff]
    %v784 = vld [vmem:[#allocation13 + $0x70] sm:$0xff]
    %v785 = vld [vmem:[#allocation13 + $0x78] sm:$0xff]
    %v786 = vld [vmem:[#allocation13 + $0x80] sm:$0xff]
    %v787 = vld [vmem:[#allocation13 + $0x88] sm:$0xff]
    %v788 = vld [vmem:[#allocation13 + $0x90] sm:$0xff]
    %v789 = vld [vmem:[#allocation13 + $0x98] sm:$0xff]
    %v790 = vld [vmem:[#allocation13 + $0xa0] sm:$0xff]
    %v791 = vld [vmem:[#allocation13 + $0xa8] sm:$0xff]
    %v792 = vld [vmem:[#allocation13 + $0xb0] sm:$0xff]
    %v793 = vld [vmem:[#allocation13 + $0xb8] sm:$0xff]
    %v794 = vld [vmem:[#allocation13 + $0xc0] sm:$0xff]
    %v795 = vld [vmem:[#allocation13 + $0xc8] sm:$0xff]
    %v796 = vld [vmem:[#allocation13 + $0xd0] sm:$0xff]
    %v797 = vld [vmem:[#allocation13 + $0xd8] sm:$0xff]
    %v798 = vld [vmem:[#allocation13 + $0xe0] sm:$0xff]
    %v799 = vld [vmem:[#allocation13 + $0xe8] sm:$0xff]
    %v800 = vld [vmem:[#allocation13 + $0xf0] sm:$0xff]
    %v801 = vld [vmem:[#allocation13 + $0xf8] sm:$0xff]
    %v802 = vld [vmem:[%s11] sm:$0x3]
    %v804 = vlaneseq
    %v805 = vshrl.u32 %v804, 7
    %v806 = vsub.s32 0, %v805
    %v807 = vrot.slane %v802, %v806
    %v808 = vlaneseq
    %v809 = vshrl.u32 %v808, 7
    %v810 = vsub.s32 1, %v809
    %v811 = vrot.slane %v802, %v810
    %v846 = vunpack.c.l.b16 %v770
    %v847 = vunpack.c.h.b16 %v770
    %v848 = vunpack.c.l.b16 %v771
    %v849 = vunpack.c.h.b16 %v771
    %v850 = vunpack.c.l.b16 %v772
    %v851 = vunpack.c.h.b16 %v772
    %v852 = vunpack.c.l.b16 %v773
    %v853 = vunpack.c.h.b16 %v773
    %v854 = vunpack.c.l.b16 %v774
    %v855 = vunpack.c.h.b16 %v774
    %v856 = vunpack.c.l.b16 %v775
    %v857 = vunpack.c.h.b16 %v775
    %v858 = vunpack.c.l.b16 %v776
    %v859 = vunpack.c.h.b16 %v776
    %v860 = vunpack.c.l.b16 %v777
    %v861 = vunpack.c.h.b16 %v777
    %v862 = vunpack.c.l.b16 %v778
    %v863 = vunpack.c.h.b16 %v778
    %v864 = vunpack.c.l.b16 %v779
    %v865 = vunpack.c.h.b16 %v779
    %v866 = vunpack.c.l.b16 %v780
    %v867 = vunpack.c.h.b16 %v780
    %v868 = vunpack.c.l.b16 %v781
    %v869 = vunpack.c.h.b16 %v781
    %v870 = vunpack.c.l.b16 %v782
    %v871 = vunpack.c.h.b16 %v782
    %v872 = vunpack.c.l.b16 %v783
    %v873 = vunpack.c.h.b16 %v783
    %v874 = vunpack.c.l.b16 %v784
    %v875 = vunpack.c.h.b16 %v784
    %v876 = vunpack.c.l.b16 %v785
    %v877 = vunpack.c.h.b16 %v785
    %v878 = vunpack.c.l.b16 %v786
    %v879 = vunpack.c.h.b16 %v786
    %v880 = vunpack.c.l.b16 %v787
    %v881 = vunpack.c.h.b16 %v787
    %v882 = vunpack.c.l.b16 %v788
    %v883 = vunpack.c.h.b16 %v788
    %v884 = vunpack.c.l.b16 %v789
    %v885 = vunpack.c.h.b16 %v789
    %v886 = vunpack.c.l.b16 %v790
    %v887 = vunpack.c.h.b16 %v790
    %v888 = vunpack.c.l.b16 %v791
    %v889 = vunpack.c.h.b16 %v791
    %v890 = vunpack.c.l.b16 %v792
    %v891 = vunpack.c.h.b16 %v792
    %v892 = vunpack.c.l.b16 %v793
    %v893 = vunpack.c.h.b16 %v793
    %v894 = vunpack.c.l.b16 %v794
    %v895 = vunpack.c.h.b16 %v794
    %v896 = vunpack.c.l.b16 %v795
    %v897 = vunpack.c.h.b16 %v795
    %v898 = vunpack.c.l.b16 %v796
    %v899 = vunpack.c.h.b16 %v796
    %v900 = vunpack.c.l.b16 %v797
    %v901 = vunpack.c.h.b16 %v797
    %v902 = vunpack.c.l.b16 %v798
    %v903 = vunpack.c.h.b16 %v798
    %v904 = vunpack.c.l.b16 %v799
    %v905 = vunpack.c.h.b16 %v799
    %v906 = vunpack.c.l.b16 %v800
    %v907 = vunpack.c.h.b16 %v800
    %v908 = vunpack.c.l.b16 %v801
    %v909 = vunpack.c.h.b16 %v801
    %v910 = vpack.c.b16 %v848, %v846
    %v911 = vpack.c.b16 %v849, %v847
    %v912 = vpack.c.b16 %v852, %v850
    %v913 = vpack.c.b16 %v853, %v851
    %v914 = vpack.c.b16 %v856, %v854
    %v915 = vpack.c.b16 %v857, %v855
    %v916 = vpack.c.b16 %v860, %v858
    %v917 = vpack.c.b16 %v861, %v859
    %v918 = vpack.c.b16 %v864, %v862
    %v919 = vpack.c.b16 %v865, %v863
    %v920 = vpack.c.b16 %v868, %v866
    %v921 = vpack.c.b16 %v869, %v867
    %v922 = vpack.c.b16 %v872, %v870
    %v923 = vpack.c.b16 %v873, %v871
    %v924 = vpack.c.b16 %v876, %v874
    %v925 = vpack.c.b16 %v877, %v875
    %v926 = vpack.c.b16 %v880, %v878
    %v927 = vpack.c.b16 %v881, %v879
    %v928 = vpack.c.b16 %v884, %v882
    %v929 = vpack.c.b16 %v885, %v883
    %v930 = vpack.c.b16 %v888, %v886
    %v931 = vpack.c.b16 %v889, %v887
    %v932 = vpack.c.b16 %v892, %v890
    %v933 = vpack.c.b16 %v893, %v891
    %v934 = vpack.c.b16 %v896, %v894
    %v935 = vpack.c.b16 %v897, %v895
    %v936 = vpack.c.b16 %v900, %v898
    %v937 = vpack.c.b16 %v901, %v899
    %v938 = vpack.c.b16 %v904, %v902
    %v939 = vpack.c.b16 %v905, %v903
    %v940 = vpack.c.b16 %v908, %v906
    %v941 = vpack.c.b16 %v909, %v907
    %974 = vmatprep.subr.bf16.mxu0 %v925
    %975 = vmatpush1.bf16.msra.mxu0 %v924
    %976 = vmatprep.subr.bf16.mxu0 %v923
    %977 = vmatpush1.bf16.msra.mxu0 %v922
    %978 = vmatprep.subr.bf16.mxu0 %v921
    %979 = vmatpush1.bf16.msra.mxu0 %v920
    %980 = vmatprep.subr.bf16.mxu0 %v919
    %981 = vmatpush1.bf16.msra.mxu0 %v918
    %982 = vmatprep.subr.bf16.mxu0 %v917
    %983 = vmatpush1.bf16.msra.mxu0 %v916
    %984 = vmatprep.subr.bf16.mxu0 %v915
    %985 = vmatpush1.bf16.msra.mxu0 %v914
    %986 = vmatprep.subr.bf16.mxu0 %v913
    %987 = vmatpush1.bf16.msra.mxu0 %v912
    %988 = vmatprep.subr.bf16.mxu0 %v911
    %989 = vmatpush1.bf16.msra.mxu0 %v910
    %990 = vmatprep.subr.bf16.mxu0 %v941
    %991 = vmatpush2.bf16.msra.mxu0 %v940
    %992 = vmatprep.subr.bf16.mxu0 %v939
    %993 = vmatpush2.bf16.msra.mxu0 %v938
    %994 = vmatprep.subr.bf16.mxu0 %v937
    %995 = vmatpush2.bf16.msra.mxu0 %v936
    %996 = vmatprep.subr.bf16.mxu0 %v935
    %997 = vmatpush2.bf16.msra.mxu0 %v934
    %998 = vmatprep.subr.bf16.mxu0 %v933
    %999 = vmatpush2.bf16.msra.mxu0 %v932
    %1000 = vmatprep.subr.bf16.mxu0 %v931
    %1001 = vmatpush2.bf16.msra.mxu0 %v930
    %1002 = vmatprep.subr.bf16.mxu0 %v929
    %1003 = vmatpush2.bf16.msra.mxu0 %v928
    %1004 = vmatprep.subr.bf16.mxu0 %v927
    %1005 = vmatpush2.bf16.msra.mxu0 %v926
    %1006 = vmatprep.mubr.bf16.mxu0 %v769
    %1007 = vmatmul.mubr.bf16.gmra.mxu0 %v768
    %v1008 = vpop.f32.mrf.mxu0
    %v1009 = vadd.f32 %v807, %v1008
    %v1010 = vpop.f32.mrf.mxu0
    %v1011 = vadd.f32 %v811, %v1010
    %v1012 = vpop.f32.mrf.mxu0
    %v1013 = vpop.f32.mrf.mxu0
    %1014 = vdwg.mxu0
    %v1015 = vmul.f32 %v1009, 0.2
    %v1016 = vmul.f32 %v1011, 0.2
    %v1017 = vmax.f32 %v1009, %v1015
    %v1018 = vmax.f32 %v1011, %v1016
    %v1019 = vpack.c.bf16 %v1017, %v1017
    %v1020 = vpack.c.bf16 %v1018, %v1018
    %v1021 = vld [vmem:[%s12] sm:$0xf]
    %v1022 = vld [vmem:[%s12 + $0x4] sm:$0xf]
    %v1023 = vld [vmem:[%s12 + $0x8] sm:$0xf]
    %v1024 = vld [vmem:[%s12 + $0xc] sm:$0xf]
    %v1025 = vld [vmem:[%s12 + $0x10] sm:$0xf]
    %v1026 = vld [vmem:[%s12 + $0x14] sm:$0xf]
    %v1027 = vld [vmem:[%s12 + $0x18] sm:$0xf]
    %v1028 = vld [vmem:[%s12 + $0x1c] sm:$0xf]
    %v1029 = vld [vmem:[%s12 + $0x20] sm:$0xf]
    %v1030 = vld [vmem:[%s12 + $0x24] sm:$0xf]
    %v1031 = vld [vmem:[%s12 + $0x28] sm:$0xf]
    %v1032 = vld [vmem:[%s12 + $0x2c] sm:$0xf]
    %v1033 = vld [vmem:[%s12 + $0x30] sm:$0xf]
    %v1034 = vld [vmem:[%s12 + $0x34] sm:$0xf]
    %v1035 = vld [vmem:[%s12 + $0x38] sm:$0xf]
    %v1036 = vld [vmem:[%s12 + $0x3c] sm:$0xf]
    %v1037 = vld [vmem:[%s12 + $0x40] sm:$0xf]
    %v1038 = vld [vmem:[%s12 + $0x44] sm:$0xf]
    %v1039 = vld [vmem:[%s12 + $0x48] sm:$0xf]
    %v1040 = vld [vmem:[%s12 + $0x4c] sm:$0xf]
    %v1041 = vld [vmem:[%s12 + $0x50] sm:$0xf]
    %v1042 = vld [vmem:[%s12 + $0x54] sm:$0xf]
    %v1043 = vld [vmem:[%s12 + $0x58] sm:$0xf]
    %v1044 = vld [vmem:[%s12 + $0x5c] sm:$0xf]
    %v1045 = vld [vmem:[%s12 + $0x60] sm:$0xf]
    %v1046 = vld [vmem:[%s12 + $0x64] sm:$0xf]
    %v1047 = vld [vmem:[%s12 + $0x68] sm:$0xf]
    %v1048 = vld [vmem:[%s12 + $0x6c] sm:$0xf]
    %v1049 = vld [vmem:[%s12 + $0x70] sm:$0xf]
    %v1050 = vld [vmem:[%s12 + $0x74] sm:$0xf]
    %v1051 = vld [vmem:[%s12 + $0x78] sm:$0xf]
    %v1052 = vld [vmem:[%s12 + $0x7c] sm:$0xf]
    %v1053 = vld [vmem:[%s13] sm:$0x1]
    %v1055 = vlaneseq
    %v1056 = vshrl.u32 %v1055, 7
    %v1057 = vsub.s32 0, %v1056
    %v1058 = vrot.slane %v1053, %v1057
    %v1092 = vunpack.c.l.b16 %v1021
    %v1093 = vunpack.c.l.b16 %v1022
    %v1094 = vunpack.c.l.b16 %v1023
    %v1095 = vunpack.c.l.b16 %v1024
    %v1096 = vunpack.c.l.b16 %v1025
    %v1097 = vunpack.c.l.b16 %v1026
    %v1098 = vunpack.c.l.b16 %v1027
    %v1099 = vunpack.c.l.b16 %v1028
    %v1100 = vunpack.c.l.b16 %v1029
    %v1101 = vunpack.c.l.b16 %v1030
    %v1102 = vunpack.c.l.b16 %v1031
    %v1103 = vunpack.c.l.b16 %v1032
    %v1104 = vunpack.c.l.b16 %v1033
    %v1105 = vunpack.c.l.b16 %v1034
    %v1106 = vunpack.c.l.b16 %v1035
    %v1107 = vunpack.c.l.b16 %v1036
    %v1108 = vunpack.c.l.b16 %v1037
    %v1109 = vunpack.c.l.b16 %v1038
    %v1110 = vunpack.c.l.b16 %v1039
    %v1111 = vunpack.c.l.b16 %v1040
    %v1112 = vunpack.c.l.b16 %v1041
    %v1113 = vunpack.c.l.b16 %v1042
    %v1114 = vunpack.c.l.b16 %v1043
    %v1115 = vunpack.c.l.b16 %v1044
    %v1116 = vunpack.c.l.b16 %v1045
    %v1117 = vunpack.c.l.b16 %v1046
    %v1118 = vunpack.c.l.b16 %v1047
    %v1119 = vunpack.c.l.b16 %v1048
    %v1120 = vunpack.c.l.b16 %v1049
    %v1121 = vunpack.c.l.b16 %v1050
    %v1122 = vunpack.c.l.b16 %v1051
    %v1123 = vunpack.c.l.b16 %v1052
    %v1124 = vpack.c.b16 %v1093, %v1092
    %v1125 = vpack.c.b16 %v1095, %v1094
    %v1126 = vpack.c.b16 %v1097, %v1096
    %v1127 = vpack.c.b16 %v1099, %v1098
    %v1128 = vpack.c.b16 %v1101, %v1100
    %v1129 = vpack.c.b16 %v1103, %v1102
    %v1130 = vpack.c.b16 %v1105, %v1104
    %v1131 = vpack.c.b16 %v1107, %v1106
    %v1132 = vpack.c.b16 %v1109, %v1108
    %v1133 = vpack.c.b16 %v1111, %v1110
    %v1134 = vpack.c.b16 %v1113, %v1112
    %v1135 = vpack.c.b16 %v1115, %v1114
    %v1136 = vpack.c.b16 %v1117, %v1116
    %v1137 = vpack.c.b16 %v1119, %v1118
    %v1138 = vpack.c.b16 %v1121, %v1120
    %v1139 = vpack.c.b16 %v1123, %v1122
    %1156 = vmatprep.subr.bf16.mxu0 0
    %1157 = vmatpush1.bf16.msra.mxu0 %v1131
    %1158 = vmatprep.subr.bf16.mxu0 0
    %1159 = vmatpush1.bf16.msra.mxu0 %v1130
    %1160 = vmatprep.subr.bf16.mxu0 0
    %1161 = vmatpush1.bf16.msra.mxu0 %v1129
    %1162 = vmatprep.subr.bf16.mxu0 0
    %1163 = vmatpush1.bf16.msra.mxu0 %v1128
    %1164 = vmatprep.subr.bf16.mxu0 0
    %1165 = vmatpush1.bf16.msra.mxu0 %v1127
    %1166 = vmatprep.subr.bf16.mxu0 0
    %1167 = vmatpush1.bf16.msra.mxu0 %v1126
    %1168 = vmatprep.subr.bf16.mxu0 0
    %1169 = vmatpush1.bf16.msra.mxu0 %v1125
    %1170 = vmatprep.subr.bf16.mxu0 0
    %1171 = vmatpush1.bf16.msra.mxu0 %v1124
    %1172 = vmatprep.subr.bf16.mxu0 0
    %1173 = vmatpush2.bf16.msra.mxu0 %v1139
    %1174 = vmatprep.subr.bf16.mxu0 0
    %1175 = vmatpush2.bf16.msra.mxu0 %v1138
    %1176 = vmatprep.subr.bf16.mxu0 0
    %1177 = vmatpush2.bf16.msra.mxu0 %v1137
    %1178 = vmatprep.subr.bf16.mxu0 0
    %1179 = vmatpush2.bf16.msra.mxu0 %v1136
    %1180 = vmatprep.subr.bf16.mxu0 0
    %1181 = vmatpush2.bf16.msra.mxu0 %v1135
    %1182 = vmatprep.subr.bf16.mxu0 0
    %1183 = vmatpush2.bf16.msra.mxu0 %v1134
    %1184 = vmatprep.subr.bf16.mxu0 0
    %1185 = vmatpush2.bf16.msra.mxu0 %v1133
    %1186 = vmatprep.subr.bf16.mxu0 0
    %1187 = vmatpush2.bf16.msra.mxu0 %v1132
    %1188 = vmatprep.mubr.bf16.mxu0 %v1020
    %1189 = vmatmul.mubr.bf16.gmra.mxu0 %v1019
    %v1190 = vpop.f32.mrf.mxu0
    %v1191 = vadd.f32 %v1058, %v1190
    %v1192 = vpop.f32.mrf.mxu0
    %v1193 = vpop.f32.mrf.mxu0
    %v1194 = vpop.f32.mrf.mxu0
    %1195 = vdwg.mxu0
    %v1196 = vmul.f32 %v1191, 0.5
    %v1197 = vmul.f32 %v1196, 1.442695
    %v1198 = vpow.pop %v1197
    %v1199 = vld [vmem:[%s1] sm:$0xff]
    %1201 = vrot.lane.b32.xlu0 %v1199, 8
    %v1202 = vpop.permute.xlu0 %1201
    %v1204 = vmul.f32 %v1198, %v1202
    %1206 = vrot.lane.b32.xlu0 %v1204, 120
    %v1207 = vpop.permute.xlu0 %1206
    %v1209 = vadd.f32 %v1191, %v1207
    %v1210 = vpack.c.bf16 %v1209, %v1209
    %v1211 = vld [vmem:[%s14] sm:$0xf]
    %v1212 = vld [vmem:[%s15] sm:$0x1]
    %v1214 = vlaneseq
    %v1215 = vshrl.u32 %v1214, 7
    %v1216 = vsub.s32 0, %v1215
    %v1217 = vrot.slane %v1212, %v1216
    %vm1219 = vcmask 64512
    %v1221 = vsel %vm1219, %v1210, 0
    %vm1223 = vcmask 1043456
    %v1225 = vsel %vm1223, %v1211, 0
    %1227 = vmatprep.subr.bf16.mxu0 0
    %1228 = vmatpush1.bf16.msra.mxu0 0
    %1229 = vmatprep.subr.bf16.mxu0 0
    %1230 = vmatpush1.bf16.msra.mxu0 0
    %1231 = vmatprep.subr.bf16.mxu0 0
    %1232 = vmatpush1.bf16.msra.mxu0 0
    %1233 = vmatprep.subr.bf16.mxu0 0
    %1234 = vmatpush1.bf16.msra.mxu0 0
    %1235 = vmatprep.subr.bf16.mxu0 0
    %1236 = vmatpush1.bf16.msra.mxu0 0
    %1237 = vmatprep.subr.bf16.mxu0 0
    %1238 = vmatpush1.bf16.msra.mxu0 0
    %1239 = vmatprep.subr.bf16.mxu0 0
    %1240 = vmatpush1.bf16.msra.mxu0 0
    %1241 = vmatprep.subr.bf16.mxu0 0
    %1242 = vmatpush1.bf16.msra.mxu0 %v1225
    %1243 = vmatprep.subr.bf16.mxu0 0
    %1244 = vmatpush2.bf16.msra.mxu0 0
    %1245 = vmatprep.subr.bf16.mxu0 0
    %1246 = vmatpush2.bf16.msra.mxu0 0
    %1247 = vmatprep.subr.bf16.mxu0 0
    %1248 = vmatpush2.bf16.msra.mxu0 0
    %1249 = vmatprep.subr.bf16.mxu0 0
    %1250 = vmatpush2.bf16.msra.mxu0 0
    %1251 = vmatprep.subr.bf16.mxu0 0
    %1252 = vmatpush2.bf16.msra.mxu0 0
    %1253 = vmatprep.subr.bf16.mxu0 0
    %1254 = vmatpush2.bf16.msra.mxu0 0
    %1255 = vmatprep.subr.bf16.mxu0 0
    %1256 = vmatpush2.bf16.msra.mxu0 0
    %1257 = vmatprep.subr.bf16.mxu0 0
    %1258 = vmatpush2.bf16.msra.mxu0 0
    %1259 = vmatprep.mubr.bf16.mxu0 0
    %1260 = vmatmul.mubr.bf16.gmra.mxu0 %v1221
    %v1261 = vpop.f32.mrf.mxu0
    %v1262 = vadd.f32 %v1217, %v1261
    %v1263 = vpop.f32.mrf.mxu0
    %v1264 = vpop.f32.mrf.mxu0
    %v1265 = vpop.f32.mrf.mxu0
    %1266 = vdwg.mxu0
    %v1267 = vmul.f32 %v1262, 0.2
    %v1268 = vmax.f32 %v1262, %v1267
    %v1269 = vpack.c.bf16 %v1268, %v1268
    %v1270 = vld [vmem:[#allocation14] sm:$0xf]
    %v1271 = vld [vmem:[#allocation14 + $0x4] sm:$0xf]
    %v1272 = vld [vmem:[#allocation14 + $0x8] sm:$0xf]
    %v1273 = vld [vmem:[#allocation14 + $0xc] sm:$0xf]
    %v1274 = vld [vmem:[#allocation14 + $0x10] sm:$0xf]
    %v1275 = vld [vmem:[#allocation14 + $0x14] sm:$0xf]
    %v1276 = vld [vmem:[#allocation14 + $0x18] sm:$0xf]
    %v1277 = vld [vmem:[#allocation14 + $0x1c] sm:$0xf]
    %v1278 = vld [vmem:[#allocation14 + $0x20] sm:$0xf]
    %v1279 = vld [vmem:[#allocation14 + $0x24] sm:$0xf]
    %v1280 = vld [vmem:[#allocation14 + $0x28] sm:$0xf]
    %v1281 = vld [vmem:[#allocation14 + $0x2c] sm:$0xf]
    %v1282 = vld [vmem:[#allocation14 + $0x30] sm:$0xf]
    %v1283 = vld [vmem:[#allocation14 + $0x34] sm:$0xf]
    %v1284 = vld [vmem:[#allocation14 + $0x38] sm:$0xf]
    %v1285 = vld [vmem:[#allocation14 + $0x3c] sm:$0xf]
    %v1286 = vld [vmem:[%s17] sm:$0x1]
    %v1288 = vlaneseq
    %v1289 = vshrl.u32 %v1288, 7
    %v1290 = vsub.s32 0, %v1289
    %v1291 = vrot.slane %v1286, %v1290
    %v1309 = vunpack.c.l.b16 %v1270
    %v1310 = vunpack.c.l.b16 %v1271
    %v1311 = vunpack.c.l.b16 %v1272
    %v1312 = vunpack.c.l.b16 %v1273
    %v1313 = vunpack.c.l.b16 %v1274
    %v1314 = vunpack.c.l.b16 %v1275
    %v1315 = vunpack.c.l.b16 %v1276
    %v1316 = vunpack.c.l.b16 %v1277
    %v1317 = vunpack.c.l.b16 %v1278
    %v1318 = vunpack.c.l.b16 %v1279
    %v1319 = vunpack.c.l.b16 %v1280
    %v1320 = vunpack.c.l.b16 %v1281
    %v1321 = vunpack.c.l.b16 %v1282
    %v1322 = vunpack.c.l.b16 %v1283
    %v1323 = vunpack.c.l.b16 %v1284
    %v1324 = vunpack.c.l.b16 %v1285
    %v1325 = vpack.c.b16 %v1310, %v1309
    %v1326 = vpack.c.b16 %v1312, %v1311
    %v1327 = vpack.c.b16 %v1314, %v1313
    %v1328 = vpack.c.b16 %v1316, %v1315
    %v1329 = vpack.c.b16 %v1318, %v1317
    %v1330 = vpack.c.b16 %v1320, %v1319
    %v1331 = vpack.c.b16 %v1322, %v1321
    %v1332 = vpack.c.b16 %v1324, %v1323
    %1341 = vmatprep.subr.bf16.mxu0 0
    %1342 = vmatpush1.bf16.msra.mxu0 %v1332
    %1343 = vmatprep.subr.bf16.mxu0 0
    %1344 = vmatpush1.bf16.msra.mxu0 %v1331
    %1345 = vmatprep.subr.bf16.mxu0 0
    %1346 = vmatpush1.bf16.msra.mxu0 %v1330
    %1347 = vmatprep.subr.bf16.mxu0 0
    %1348 = vmatpush1.bf16.msra.mxu0 %v1329
    %1349 = vmatprep.subr.bf16.mxu0 0
    %1350 = vmatpush1.bf16.msra.mxu0 %v1328
    %1351 = vmatprep.subr.bf16.mxu0 0
    %1352 = vmatpush1.bf16.msra.mxu0 %v1327
    %1353 = vmatprep.subr.bf16.mxu0 0
    %1354 = vmatpush1.bf16.msra.mxu0 %v1326
    %1355 = vmatprep.subr.bf16.mxu0 0
    %1356 = vmatpush1.bf16.msra.mxu0 %v1325
    %1357 = vmatprep.subr.bf16.mxu0 0
    %1358 = vmatpush2.bf16.msra.mxu0 0
    %1359 = vmatprep.subr.bf16.mxu0 0
    %1360 = vmatpush2.bf16.msra.mxu0 0
    %1361 = vmatprep.subr.bf16.mxu0 0
    %1362 = vmatpush2.bf16.msra.mxu0 0
    %1363 = vmatprep.subr.bf16.mxu0 0
    %1364 = vmatpush2.bf16.msra.mxu0 0
    %1365 = vmatprep.subr.bf16.mxu0 0
    %1366 = vmatpush2.bf16.msra.mxu0 0
    %1367 = vmatprep.subr.bf16.mxu0 0
    %1368 = vmatpush2.bf16.msra.mxu0 0
    %1369 = vmatprep.subr.bf16.mxu0 0
    %1370 = vmatpush2.bf16.msra.mxu0 0
    %1371 = vmatprep.subr.bf16.mxu0 0
    %1372 = vmatpush2.bf16.msra.mxu0 0
    %1373 = vmatprep.mubr.bf16.mxu0 0
    %1374 = vmatmul.mubr.bf16.gmra.mxu0 %v1269
    %v1375 = vpop.f32.mrf.mxu0
    %v1376 = vadd.f32 %v1291, %v1375
    %v1377 = vpop.f32.mrf.mxu0
    %v1378 = vpop.f32.mrf.mxu0
    %v1379 = vpop.f32.mrf.mxu0
    %1380 = vdwg.mxu0
    %v1381 = vmul.f32 %v1376, 0.2
    %v1382 = vmax.f32 %v1376, %v1381
    %v1383 = vpack.c.bf16 %v1382, %v1382
    %v1384 = vld [vmem:[#allocation16] sm:$0xf]
    %v1385 = vld [vmem:[#allocation16 + $0x4] sm:$0xf]
    %v1386 = vld [vmem:[#allocation16 + $0x8] sm:$0xf]
    %v1387 = vld [vmem:[#allocation16 + $0xc] sm:$0xf]
    %v1388 = vld [vmem:[#allocation16 + $0x10] sm:$0xf]
    %v1389 = vld [vmem:[#allocation16 + $0x14] sm:$0xf]
    %v1390 = vld [vmem:[#allocation16 + $0x18] sm:$0xf]
    %v1391 = vld [vmem:[#allocation16 + $0x1c] sm:$0xf]
    %v1392 = vld [vmem:[#allocation16 + $0x20] sm:$0xf]
    %v1393 = vld [vmem:[#allocation16 + $0x24] sm:$0xf]
    %v1394 = vld [vmem:[#allocation16 + $0x28] sm:$0xf]
    %v1395 = vld [vmem:[#allocation16 + $0x2c] sm:$0xf]
    %v1396 = vld [vmem:[#allocation16 + $0x30] sm:$0xf]
    %v1397 = vld [vmem:[#allocation16 + $0x34] sm:$0xf]
    %v1398 = vld [vmem:[#allocation16 + $0x38] sm:$0xf]
    %v1399 = vld [vmem:[#allocation16 + $0x3c] sm:$0xf]
    %v1400 = vld [vmem:[%s19] sm:$0x1]
    %v1402 = vlaneseq
    %v1403 = vshrl.u32 %v1402, 7
    %v1404 = vsub.s32 0, %v1403
    %v1405 = vrot.slane %v1400, %v1404
    %v1423 = vunpack.c.l.b16 %v1384
    %v1424 = vunpack.c.l.b16 %v1385
    %v1425 = vunpack.c.l.b16 %v1386
    %v1426 = vunpack.c.l.b16 %v1387
    %v1427 = vunpack.c.l.b16 %v1388
    %v1428 = vunpack.c.l.b16 %v1389
    %v1429 = vunpack.c.l.b16 %v1390
    %v1430 = vunpack.c.l.b16 %v1391
    %v1431 = vunpack.c.l.b16 %v1392
    %v1432 = vunpack.c.l.b16 %v1393
    %v1433 = vunpack.c.l.b16 %v1394
    %v1434 = vunpack.c.l.b16 %v1395
    %v1435 = vunpack.c.l.b16 %v1396
    %v1436 = vunpack.c.l.b16 %v1397
    %v1437 = vunpack.c.l.b16 %v1398
    %v1438 = vunpack.c.l.b16 %v1399
    %v1439 = vpack.c.b16 %v1424, %v1423
    %v1440 = vpack.c.b16 %v1426, %v1425
    %v1441 = vpack.c.b16 %v1428, %v1427
    %v1442 = vpack.c.b16 %v1430, %v1429
    %v1443 = vpack.c.b16 %v1432, %v1431
    %v1444 = vpack.c.b16 %v1434, %v1433
    %v1445 = vpack.c.b16 %v1436, %v1435
    %v1446 = vpack.c.b16 %v1438, %v1437
    %1455 = vmatprep.subr.bf16.mxu0 0
    %1456 = vmatpush1.bf16.msra.mxu0 %v1446
    %1457 = vmatprep.subr.bf16.mxu0 0
    %1458 = vmatpush1.bf16.msra.mxu0 %v1445
    %1459 = vmatprep.subr.bf16.mxu0 0
    %1460 = vmatpush1.bf16.msra.mxu0 %v1444
    %1461 = vmatprep.subr.bf16.mxu0 0
    %1462 = vmatpush1.bf16.msra.mxu0 %v1443
    %1463 = vmatprep.subr.bf16.mxu0 0
    %1464 = vmatpush1.bf16.msra.mxu0 %v1442
    %1465 = vmatprep.subr.bf16.mxu0 0
    %1466 = vmatpush1.bf16.msra.mxu0 %v1441
    %1467 = vmatprep.subr.bf16.mxu0 0
    %1468 = vmatpush1.bf16.msra.mxu0 %v1440
    %1469 = vmatprep.subr.bf16.mxu0 0
    %1470 = vmatpush1.bf16.msra.mxu0 %v1439
    %1471 = vmatprep.subr.bf16.mxu0 0
    %1472 = vmatpush2.bf16.msra.mxu0 0
    %1473 = vmatprep.subr.bf16.mxu0 0
    %1474 = vmatpush2.bf16.msra.mxu0 0
    %1475 = vmatprep.subr.bf16.mxu0 0
    %1476 = vmatpush2.bf16.msra.mxu0 0
    %1477 = vmatprep.subr.bf16.mxu0 0
    %1478 = vmatpush2.bf16.msra.mxu0 0
    %1479 = vmatprep.subr.bf16.mxu0 0
    %1480 = vmatpush2.bf16.msra.mxu0 0
    %1481 = vmatprep.subr.bf16.mxu0 0
    %1482 = vmatpush2.bf16.msra.mxu0 0
    %1483 = vmatprep.subr.bf16.mxu0 0
    %1484 = vmatpush2.bf16.msra.mxu0 0
    %1485 = vmatprep.subr.bf16.mxu0 0
    %1486 = vmatpush2.bf16.msra.mxu0 0
    %1487 = vmatprep.mubr.bf16.mxu0 0
    %1488 = vmatmul.mubr.bf16.gmra.mxu0 %v1383
    %v1489 = vpop.f32.mrf.mxu0
    %v1490 = vadd.f32 %v1405, %v1489
    %v1491 = vpop.f32.mrf.mxu0
    %v1492 = vpop.f32.mrf.mxu0
    %v1493 = vpop.f32.mrf.mxu0
    %1494 = vdwg.mxu0
    %v1495 = vmul.f32 %v1490, 0.2
    %v1496 = vmax.f32 %v1490, %v1495
    %v1497 = vpack.c.bf16 %v1496, %v1496
    %v1498 = vld [vmem:[#allocation17] sm:$0xff]
    %v1499 = vld [vmem:[#allocation17 + $0x8] sm:$0xff]
    %v1500 = vld [vmem:[#allocation17 + $0x10] sm:$0xff]
    %v1501 = vld [vmem:[#allocation17 + $0x18] sm:$0xff]
    %v1502 = vld [vmem:[#allocation17 + $0x20] sm:$0xff]
    %v1503 = vld [vmem:[#allocation17 + $0x28] sm:$0xff]
    %v1504 = vld [vmem:[#allocation17 + $0x30] sm:$0xff]
    %v1505 = vld [vmem:[#allocation17 + $0x38] sm:$0xff]
    %v1506 = vld [vmem:[#allocation17 + $0x40] sm:$0xff]
    %v1507 = vld [vmem:[#allocation17 + $0x48] sm:$0xff]
    %v1508 = vld [vmem:[#allocation17 + $0x50] sm:$0xff]
    %v1509 = vld [vmem:[#allocation17 + $0x58] sm:$0xff]
    %v1510 = vld [vmem:[#allocation17 + $0x60] sm:$0xff]
    %v1511 = vld [vmem:[#allocation17 + $0x68] sm:$0xff]
    %v1512 = vld [vmem:[#allocation17 + $0x70] sm:$0xff]
    %v1513 = vld [vmem:[#allocation17 + $0x78] sm:$0xff]
    %v1514 = vld [vmem:[%s21] sm:$0x3]
    %v1516 = vlaneseq
    %v1517 = vshrl.u32 %v1516, 7
    %v1518 = vsub.s32 0, %v1517
    %v1519 = vrot.slane %v1514, %v1518
    %v1520 = vlaneseq
    %v1521 = vshrl.u32 %v1520, 7
    %v1522 = vsub.s32 1, %v1521
    %v1523 = vrot.slane %v1514, %v1522
    %v1542 = vunpack.c.l.b16 %v1498
    %v1543 = vunpack.c.h.b16 %v1498
    %v1544 = vunpack.c.l.b16 %v1499
    %v1545 = vunpack.c.h.b16 %v1499
    %v1546 = vunpack.c.l.b16 %v1500
    %v1547 = vunpack.c.h.b16 %v1500
    %v1548 = vunpack.c.l.b16 %v1501
    %v1549 = vunpack.c.h.b16 %v1501
    %v1550 = vunpack.c.l.b16 %v1502
    %v1551 = vunpack.c.h.b16 %v1502
    %v1552 = vunpack.c.l.b16 %v1503
    %v1553 = vunpack.c.h.b16 %v1503
    %v1554 = vunpack.c.l.b16 %v1504
    %v1555 = vunpack.c.h.b16 %v1504
    %v1556 = vunpack.c.l.b16 %v1505
    %v1557 = vunpack.c.h.b16 %v1505
    %v1558 = vunpack.c.l.b16 %v1506
    %v1559 = vunpack.c.h.b16 %v1506
    %v1560 = vunpack.c.l.b16 %v1507
    %v1561 = vunpack.c.h.b16 %v1507
    %v1562 = vunpack.c.l.b16 %v1508
    %v1563 = vunpack.c.h.b16 %v1508
    %v1564 = vunpack.c.l.b16 %v1509
    %v1565 = vunpack.c.h.b16 %v1509
    %v1566 = vunpack.c.l.b16 %v1510
    %v1567 = vunpack.c.h.b16 %v1510
    %v1568 = vunpack.c.l.b16 %v1511
    %v1569 = vunpack.c.h.b16 %v1511
    %v1570 = vunpack.c.l.b16 %v1512
    %v1571 = vunpack.c.h.b16 %v1512
    %v1572 = vunpack.c.l.b16 %v1513
    %v1573 = vunpack.c.h.b16 %v1513
    %v1574 = vpack.c.b16 %v1544, %v1542
    %v1575 = vpack.c.b16 %v1545, %v1543
    %v1576 = vpack.c.b16 %v1548, %v1546
    %v1577 = vpack.c.b16 %v1549, %v1547
    %v1578 = vpack.c.b16 %v1552, %v1550
    %v1579 = vpack.c.b16 %v1553, %v1551
    %v1580 = vpack.c.b16 %v1556, %v1554
    %v1581 = vpack.c.b16 %v1557, %v1555
    %v1582 = vpack.c.b16 %v1560, %v1558
    %v1583 = vpack.c.b16 %v1561, %v1559
    %v1584 = vpack.c.b16 %v1564, %v1562
    %v1585 = vpack.c.b16 %v1565, %v1563
    %v1586 = vpack.c.b16 %v1568, %v1566
    %v1587 = vpack.c.b16 %v1569, %v1567
    %v1588 = vpack.c.b16 %v1572, %v1570
    %v1589 = vpack.c.b16 %v1573, %v1571
    %1606 = vmatprep.subr.bf16.mxu0 %v1589
    %1607 = vmatpush1.bf16.msra.mxu0 %v1588
    %1608 = vmatprep.subr.bf16.mxu0 %v1587
    %1609 = vmatpush1.bf16.msra.mxu0 %v1586
    %1610 = vmatprep.subr.bf16.mxu0 %v1585
    %1611 = vmatpush1.bf16.msra.mxu0 %v1584
    %1612 = vmatprep.subr.bf16.mxu0 %v1583
    %1613 = vmatpush1.bf16.msra.mxu0 %v1582
    %1614 = vmatprep.subr.bf16.mxu0 %v1581
    %1615 = vmatpush1.bf16.msra.mxu0 %v1580
    %1616 = vmatprep.subr.bf16.mxu0 %v1579
    %1617 = vmatpush1.bf16.msra.mxu0 %v1578
    %1618 = vmatprep.subr.bf16.mxu0 %v1577
    %1619 = vmatpush1.bf16.msra.mxu0 %v1576
    %1620 = vmatprep.subr.bf16.mxu0 %v1575
    %1621 = vmatpush1.bf16.msra.mxu0 %v1574
    %1622 = vmatprep.subr.bf16.mxu0 0
    %1623 = vmatpush2.bf16.msra.mxu0 0
    %1624 = vmatprep.subr.bf16.mxu0 0
    %1625 = vmatpush2.bf16.msra.mxu0 0
    %1626 = vmatprep.subr.bf16.mxu0 0
    %1627 = vmatpush2.bf16.msra.mxu0 0
    %1628 = vmatprep.subr.bf16.mxu0 0
    %1629 = vmatpush2.bf16.msra.mxu0 0
    %1630 = vmatprep.subr.bf16.mxu0 0
    %1631 = vmatpush2.bf16.msra.mxu0 0
    %1632 = vmatprep.subr.bf16.mxu0 0
    %1633 = vmatpush2.bf16.msra.mxu0 0
    %1634 = vmatprep.subr.bf16.mxu0 0
    %1635 = vmatpush2.bf16.msra.mxu0 0
    %1636 = vmatprep.subr.bf16.mxu0 0
    %1637 = vmatpush2.bf16.msra.mxu0 0
    %1638 = vmatprep.mubr.bf16.mxu0 0
    %1639 = vmatmul.mubr.bf16.gmra.mxu0 %v1497
    %v1640 = vpop.f32.mrf.mxu0
    %v1641 = vadd.f32 %v1519, %v1640
    %v1642 = vpop.f32.mrf.mxu0
    %v1643 = vadd.f32 %v1523, %v1642
    %v1644 = vpop.f32.mrf.mxu0
    %v1645 = vpop.f32.mrf.mxu0
    %1646 = vdwg.mxu0
    %v1647 = vxor.u32 %v1641, 2147483648
    %v1648 = vxor.u32 %v1643, 2147483648
    %v1649 = vmul.f32 %v1647, 1.442695
    %v1650 = vpow.pop %v1649
    %v1651 = vmul.f32 %v1648, 1.442695
    %v1652 = vpow.pop %v1651
    %v1653 = vadd.f32 %v1650, 1.0
    %v1654 = vadd.f32 %v1652, 1.0
    %v1655 = vrcp.pop %v1653
    %v1656 = vmul.f32 1.0, %v1655
    %v1657 = vrcp.pop %v1654
    %v1658 = vmul.f32 1.0, %v1657
    %1659 = vst [vmem:[#allocation19] sm:$0xff] %v1656
    %1660 = vst [vmem:[#allocation19 + $0x8] sm:$0xff] %v1658
    %vm1661 = vcmask 130048
    %1662 = vst.msk [vmem:[%s23] sm:$0xff] %vm1661, %v1191
    // Predicated region
    $region130: #{vae_forward_pallas.1} parent=1 // pred_check
      _
    $region131: #{vae_forward_pallas.1} parent=1 // pred_check_branch
      %1664 = sbr.rel (0) target = $region133
    $region132: #{vae_forward_pallas.1} parent=1 // pred_region
      %s1666 = ssub.s32 256, 256
      %1667 = vsyncadd [#allocation4], %s1666
      %s1669 = sshll.u32 [#allocation19], 4
      %s1670 = int_to_ptr.vmem [resolvable:$true] %s1669
      %1672 = dma.vmem_to_hbm [thread:$0]  %s1670, 256, %s22, [#allocation4]
    $region133: #{vae_forward_pallas.1} parent=1 // pred_fallthru
      _
    // Predicated region
    $region134: #{vae_forward_pallas.1} parent=1 // pred_check
      _
    $region135: #{vae_forward_pallas.1} parent=1 // pred_check_branch
      %1674 = sbr.rel (0) target = $region137
    $region136: #{vae_forward_pallas.1} parent=1 // pred_region
      _
    $region137: #{vae_forward_pallas.1} parent=1 // pred_fallthru
      _
    // Predicated region
    $region138: #{vae_forward_pallas.1} parent=1 // pred_check
      _
    $region139: #{vae_forward_pallas.1} parent=1 // pred_check_branch
      %1676 = sbr.rel (0) target = $region141
    $region140: #{vae_forward_pallas.1} parent=1 // pred_region
      %1677 = dma.done [#allocation4], 256
    $region141: #{vae_forward_pallas.1} parent=1 // pred_fallthru
      _
    // Predicated region
    $region142: #{vae_forward_pallas.1} parent=1 // pred_check
      _
    $region143: #{vae_forward_pallas.1} parent=1 // pred_check_branch
      %1679 = sbr.rel (0) target = $region145
    $region144: #{vae_forward_pallas.1} parent=1 // pred_region
      _
    $region145: #{vae_forward_pallas.1} parent=1 // pred_fallthru
      _
    %1680 = vsyncpa [#allocation3], 1
    %1681 = vsyncpa [#allocation6], 1
    %1682 = vsyncpa [#allocation9], 1
    %1683 = vsyncpa [#allocation12], 1
    %1684 = vsyncpa [#allocation15], 1
    %1685 = vsyncpa [#allocation18], 1
    %1686 = vsyncpa [#allocation4], 1

</llo_original>
